<compile_context>
chip_gen: v5e
topology: v5e:2x2
jax: 0.10.0
libtpu: 0.0.40
codegen_flags: <defaults>
</compile_context>

<pallas_src>
import functools

import jax
import jax.numpy as jnp
from jax import lax
from jax.experimental import pallas as pl
from jax.experimental.pallas import tpu as pltpu

HIDDEN = 256                # num_neurons_per_hidden_layer
NUM_HIDDEN_LAYERS = 6       # hidden->hidden Linear+SELU blocks after the first layer
MAX_BATCH_TILE = 512        # large tile: per-grid-step overhead <10%, VMEM cost tiny

SELU_ALPHA = 1.6732632423543772
SELU_SCALE = 1.0507009873554805


def _round_up(x, m):
    return (x + m - 1) // m * m


def _cdiv(a, b):
    return -(-a // b)


def _device_kind():
    try:
        return jax.devices()[0].device_kind.lower()
    except Exception:
        return ""


def _bf16_elementwise_supported():
    """bf16 VALU/EUP exist on v6e/v7x; v5e and older emulate bf16 elementwise."""
    kind = _device_kind()
    return not any(t in kind for t in ("v2", "v3", "v4", "v5e", "v5 lite", "v5lite"))


def _is_two_tensorcore_chip():
    """v7x has 2 TensorCores per chip; give both a grid step when B is large."""
    kind = _device_kind()
    return ("v7" in kind) or ("7x" in kind)


def _selu_noscale(acc, act_dtype):
    """SELU with the 1.0507 output scale folded into the NEXT layer's weights:
         s(x) = max(x, 0) + alpha * (exp(min(x, 0)) - 1)
    exp only sees the non-positive part, so the discarded branch cannot overflow."""
    a = acc.astype(act_dtype)
    zero = jnp.asarray(0.0, dtype=act_dtype)
    one = jnp.asarray(1.0, dtype=act_dtype)
    alpha = jnp.asarray(SELU_ALPHA, dtype=act_dtype)
    return jnp.maximum(a, zero) + alpha * (jnp.exp(jnp.minimum(a, zero)) - one)


def qnet_kernel(x_ref, w0_ref, b0_ref, wh_ref, bh_ref, wf_ref, bf_ref, o_ref,
                *, act_dtype):
    # Layer 0: [TB, D]bf16 @ [D, 256]bf16 -> f32 accumulator, + f32 bias, SELU.
    h = _selu_noscale(
        jnp.dot(x_ref[...], w0_ref[...], preferred_element_type=jnp.float32)
        + b0_ref[...],
        act_dtype)
    # 6 hidden Linear(256,256)+SELU blocks (SELU scale pre-folded into wh[i]).
    for i in range(NUM_HIDDEN_LAYERS):
        h = _selu_noscale(
            jnp.dot(h.astype(jnp.bfloat16), wh_ref[i],
                    preferred_element_type=jnp.float32)
            + bh_ref[i],
            act_dtype)
    # Final Linear(256 -> 1): contract the last (feature) dim of both operands
    # (flash-attention q.k^T pattern -> native transposed MXU weight push, no XLU
    # transpose of h); per-tile result (1, TB) is stored lane-dense.
    q = lax.dot_general(
        wf_ref[...], h.astype(jnp.bfloat16),
        dimension_numbers=(((1,), (1,)), ((), ())),
        preferred_element_type=jnp.float32,
    ) + bf_ref[0, 0]
    o_ref[...] = q.astype(o_ref.dtype)


def init_qnet_params(key, in_dim):
    """Deterministic init mimicking torch.nn.Linear default (U[-1/sqrt(fan_in), ...])."""

    def linear(k, fan_in, fan_out):
        kw, kb = jax.random.split(k)
        bound = 1.0 / jnp.sqrt(jnp.float32(fan_in))
        w = jax.random.uniform(kw, (fan_in, fan_out), jnp.float32, -bound, bound)
        b = jax.random.uniform(kb, (1, fan_out), jnp.float32, -bound, bound)
        return w, b

    keys = jax.random.split(key, 2 + NUM_HIDDEN_LAYERS)
    w0, b0 = linear(keys[0], in_dim, HIDDEN)
    whs, bhs = [], []
    for i in range(NUM_HIDDEN_LAYERS):
        w, b = linear(keys[1 + i], HIDDEN, HIDDEN)
        whs.append(w)
        bhs.append(b)
    wh = jnp.stack(whs)                       # [6, 256, 256]
    bh = jnp.stack(bhs)                       # [6, 1, 256]
    wf, bf = linear(keys[-1], HIDDEN, 1)      # [256, 1], [1, 1]
    return (w0, b0, wh, bh, wf, bf)


def prepare_qnet_params(params):
    """One-time weight preprocessing (do this ONCE, outside the hot path):
    bf16 MXU weights, wf pre-transposed to [1, 256], SELU scale folded into every
    weight matrix that consumes a SELU output (wh[i], wf). Biases stay f32."""
    w0, b0, wh, bh, wf, bf = params
    scale = jnp.float32(SELU_SCALE)
    return (
        w0.astype(jnp.bfloat16),                                        # [in_dim, 256]
        b0.reshape(1, HIDDEN).astype(jnp.float32),                      # [1, 256]
        (scale * wh).astype(jnp.bfloat16),                              # [6, 256, 256]
        bh.reshape(NUM_HIDDEN_LAYERS, 1, HIDDEN).astype(jnp.float32),   # [6, 1, 256]
        (scale * wf).T.astype(jnp.bfloat16),                            # wf^T [1, 256]
        bf.reshape(1, 1).astype(jnp.float32),                           # [1, 1]
    )


@functools.partial(jax.jit, static_argnames=("bf16_act", "two_tensorcores"))
def qnet_forward(features, scalars, actions, prepared, *, bf16_act=True,
                 two_tensorcores=False):
    # torch.cat(..., dim=1); cast straight to bf16 for the MXU (no f32 round-trip).
    # TODO(synk): optionally pass features/scalars/actions separately and split w0
    # by rows in-kernel to drop the concat materialization for tiny-latency calls.
    x = jnp.concatenate([features, scalars, actions], axis=1).astype(jnp.bfloat16)
    B, in_dim = x.shape
    w0, b0, wh, bh, wf_t, bf = prepared

    # Batch tiling: big tiles amortize per-grid-step overhead; small B rounds up
    # to a 16-row (bf16 sublane) single tile; on 2-TensorCore chips force >=2
    # grid steps once B >= 512 so the "parallel" axis feeds both cores.
    TB = min(MAX_BATCH_TILE, _round_up(B, 16))
    if two_tensorcores and B >= 512:
        TB = min(TB, _round_up(_cdiv(B, 2), 128))
    B_pad = _round_up(B, TB)
    if B_pad != B:
        x = jnp.pad(x, ((0, B_pad - B), (0, 0)))
    num_tiles = B_pad // TB

    act_dtype = jnp.bfloat16 if bf16_act else jnp.float32
    kernel = functools.partial(qnet_kernel, act_dtype=act_dtype)

    flops = 2 * B_pad * (in_dim * HIDDEN
                         + NUM_HIDDEN_LAYERS * HIDDEN * HIDDEN + HIDDEN)
    transcendentals = (1 + NUM_HIDDEN_LAYERS) * B_pad * HIDDEN
    bytes_accessed = (
        B_pad * in_dim * 2                                                       # x (bf16)
        + (in_dim * HIDDEN + NUM_HIDDEN_LAYERS * HIDDEN * HIDDEN + HIDDEN) * 2   # weights
        + ((1 + NUM_HIDDEN_LAYERS) * HIDDEN + 1) * 4                             # biases
        + B_pad * 4                                                              # output
    )

    out = pl.pallas_call(
        kernel,
        out_shape=jax.ShapeDtypeStruct((1, B_pad), jnp.float32),
        grid=(num_tiles,),
        in_specs=[
            pl.BlockSpec((TB, in_dim), lambda i: (i, 0)),                          # x tile
            pl.BlockSpec((in_dim, HIDDEN), lambda i: (0, 0)),                      # w0 (resident)
            pl.BlockSpec((1, HIDDEN), lambda i: (0, 0)),                           # b0
            pl.BlockSpec((NUM_HIDDEN_LAYERS, HIDDEN, HIDDEN), lambda i: (0, 0, 0)),  # wh
            pl.BlockSpec((NUM_HIDDEN_LAYERS, 1, HIDDEN), lambda i: (0, 0, 0)),       # bh
            pl.BlockSpec((1, HIDDEN), lambda i: (0, 0)),                           # wf^T
            pl.BlockSpec(memory_space=pltpu.MemorySpace.SMEM),                     # bf scalar
        ],
        out_specs=pl.BlockSpec((1, TB), lambda i: (0, i)),                         # lane-dense
        compiler_params=pltpu.CompilerParams(
            dimension_semantics=("parallel",),        # megacore-shard batch tiles (v7x)
            vmem_limit_bytes=32 * 1024 * 1024,
        ),
        cost_estimate=pl.CostEstimate(
            flops=flops, transcendentals=transcendentals,
            bytes_accessed=bytes_accessed),
    )(x, w0, b0, wh, bh, wf_t, bf)

    # (1, B_pad) lane-dense slab -> (B, 1) like the torch module.
    return out.reshape(B_pad, 1)[:B]


def qnet_reference(features, scalars, actions, prepared, bf16_act=True):
    """Plain-JAX reference with the SAME prepared params / dtype path as the kernel."""
    w0, b0, wh, bh, wf_t, bf = prepared
    act_dtype = jnp.bfloat16 if bf16_act else jnp.float32
    x = jnp.concatenate([features, scalars, actions], axis=1).astype(jnp.bfloat16)
    h = _selu_noscale(
        jnp.dot(x, w0, preferred_element_type=jnp.float32) + b0, act_dtype)
    for i in range(NUM_HIDDEN_LAYERS):
        h = _selu_noscale(
            jnp.dot(h.astype(jnp.bfloat16), wh[i],
                    preferred_element_type=jnp.float32) + bh[i], act_dtype)
    return (jnp.dot(h.astype(jnp.bfloat16), wf_t.T,
                    preferred_element_type=jnp.float32) + bf[0, 0])


def qnet_reference_f32(features, scalars, actions, params):
    """Full-precision reference matching the original torch module semantics."""
    w0, b0, wh, bh, wf, bf = params
    x = jnp.concatenate([features, scalars, actions], axis=1).astype(jnp.float32)

    def selu(v):
        return SELU_SCALE * jnp.where(
            v > 0, v, SELU_ALPHA * (jnp.exp(jnp.minimum(v, 0.0)) - 1.0))

    h = selu(x @ w0 + b0)
    for i in range(NUM_HIDDEN_LAYERS):
        h = selu(h @ wh[i] + bh[i])
    return h @ wf + bf


if __name__ == "__main__":
    # Small, forward-consistent shapes.
    batch = 8
    feature_dim, scalar_dim, action_dim = 12, 3, 5
    in_dim = feature_dim + scalar_dim + action_dim

    key = jax.random.PRNGKey(0)
    k_f, k_s, k_a, k_p = jax.random.split(key, 4)
    features = jax.random.normal(k_f, (batch, feature_dim), jnp.float32)
    scalars = jax.random.normal(k_s, (batch, scalar_dim), jnp.float32)
    actions = jax.random.normal(k_a, (batch, action_dim), jnp.float32)

    params = init_qnet_params(k_p, in_dim)
    prepared = prepare_qnet_params(params)     # one-time weight prep (cache & reuse)

    bf16_act = _bf16_elementwise_supported()   # bf16 SELU on v6e/v7x, f32 on v5e-
    two_tc = _is_two_tensorcore_chip()         # split batch tiles across v7x cores

    out = jax.block_until_ready(
        qnet_forward(features, scalars, actions, prepared,
                     bf16_act=bf16_act, two_tensorcores=two_tc))

    ref = qnet_reference(features, scalars, actions, prepared, bf16_act=bf16_act)
    ref_f32 = qnet_reference_f32(features, scalars, actions, params)

    assert out.shape == (batch, 1), out.shape
    # Same-numerics reference (identical bf16 weights / folded scale / dtype path).
    assert jnp.allclose(out, ref, atol=2e-2, rtol=2e-2), (out, ref)
    # Full-f32 torch-equivalent reference (loose: bf16 weights across 8 layers).
    assert jnp.allclose(out, ref_f32, atol=1e-1, rtol=1e-1), (out, ref_f32)

    print("KERNEL_OK")
</pallas_src>

<mosaic_0001>
module attributes {stable_mosaic.version = 11 : i64} {
  func.func @qnet_kernel(%arg0: i32, %arg1: memref<16x20xbf16, #tpu.memory_space<vmem>>, %arg2: memref<20x256xbf16, #tpu.memory_space<vmem>>, %arg3: memref<1x256xf32, #tpu.memory_space<vmem>>, %arg4: memref<6x256x256xbf16, #tpu.memory_space<vmem>>, %arg5: memref<6x1x256xf32, #tpu.memory_space<vmem>>, %arg6: memref<1x256xbf16, #tpu.memory_space<vmem>>, %arg7: memref<1x1xf32, #tpu.memory_space<smem>>, %arg8: memref<1x16xf32, #tpu.memory_space<vmem>>) attributes {dimension_semantics = [#tpu.dimension_semantics<parallel>], iteration_bounds = array<i64: 1>, scalar_prefetch = 0 : i64, scratch_operands = 0 : i64, tpu.core_type = #tpu.core_type<tc>, window_params = [{transform_indices = @transform_0, window_bounds = array<i64: 16, 20>}, {pipeline_mode = #tpu.pipeline_mode<synchronous>, transform_indices = @transform_1, window_bounds = array<i64: 20, 256>}, {pipeline_mode = #tpu.pipeline_mode<synchronous>, transform_indices = @transform_2, window_bounds = array<i64: 1, 256>}, {pipeline_mode = #tpu.pipeline_mode<synchronous>, transform_indices = @transform_3, window_bounds = array<i64: 6, 256, 256>}, {pipeline_mode = #tpu.pipeline_mode<synchronous>, transform_indices = @transform_4, window_bounds = array<i64: 6, 1, 256>}, {pipeline_mode = #tpu.pipeline_mode<synchronous>, transform_indices = @transform_5, window_bounds = array<i64: 1, 256>}, {transform_indices = @transform_6, window_bounds = array<i64: 1, 1>}, {transform_indices = @transform_7, window_bounds = array<i64: 1, 16>}]} {
    %c0 = arith.constant 0 : index
    %c0_0 = arith.constant 0 : index
    %0 = vector.load %arg1[%c0, %c0_0] : memref<16x20xbf16, #tpu.memory_space<vmem>>, vector<16x20xbf16>
    %c0_1 = arith.constant 0 : index
    %c0_2 = arith.constant 0 : index
    %1 = vector.load %arg2[%c0_1, %c0_2] : memref<20x256xbf16, #tpu.memory_space<vmem>>, vector<20x256xbf16>
    %cst = arith.constant dense<0.000000e+00> : vector<16x256xf32>
    %2 = tpu.matmul %0, %1, %cst {dimension_numbers = #tpu.dot_dimension_numbers<[1], [0], [0], [1], [0, 0, 1, 1], [], []>} : vector<16x20xbf16>, vector<20x256xbf16>, vector<16x256xf32> -> vector<16x256xf32>
    %c0_3 = arith.constant 0 : index
    %c0_4 = arith.constant 0 : index
    %3 = vector.load %arg3[%c0_3, %c0_4] : memref<1x256xf32, #tpu.memory_space<vmem>>, vector<1x256xf32>
    %4 = vector.broadcast %3 : vector<1x256xf32> to vector<16x256xf32>
    %5 = arith.addf %2, %4 : vector<16x256xf32>
    %6 = arith.truncf %5 : vector<16x256xf32> to vector<16x256xbf16>
    %cst_5 = arith.constant 0.000000e+00 : bf16
    %7 = vector.broadcast %cst_5 : bf16 to vector<16x256xbf16>
    %8 = arith.maximumf %6, %7 : vector<16x256xbf16>
    %cst_6 = arith.constant 0.000000e+00 : bf16
    %9 = vector.broadcast %cst_6 : bf16 to vector<16x256xbf16>
    %10 = arith.minimumf %6, %9 : vector<16x256xbf16>
    %11 = math.exp %10 : vector<16x256xbf16>
    %cst_7 = arith.constant 1.000000e+00 : bf16
    %12 = vector.broadcast %cst_7 : bf16 to vector<16x256xbf16>
    %13 = arith.subf %11, %12 : vector<16x256xbf16>
    %cst_8 = arith.constant 1.671880e+00 : bf16
    %14 = vector.broadcast %cst_8 : bf16 to vector<16x256xbf16>
    %15 = arith.mulf %14, %13 : vector<16x256xbf16>
    %16 = arith.addf %8, %15 : vector<16x256xbf16>
    %c0_9 = arith.constant 0 : index
    %c0_10 = arith.constant 0 : index
    %c0_11 = arith.constant 0 : index
    %17 = vector.load %arg4[%c0_9, %c0_10, %c0_11] : memref<6x256x256xbf16, #tpu.memory_space<vmem>>, vector<1x256x256xbf16>
    %18 = vector.shape_cast %17 : vector<1x256x256xbf16> to vector<256x256xbf16>
    %cst_12 = arith.constant dense<0.000000e+00> : vector<16x256xf32>
    %19 = tpu.matmul %16, %18, %cst_12 {dimension_numbers = #tpu.dot_dimension_numbers<[1], [0], [0], [1], [0, 0, 1, 1], [], []>} : vector<16x256xbf16>, vector<256x256xbf16>, vector<16x256xf32> -> vector<16x256xf32>
    %c0_13 = arith.constant 0 : index
    %c0_14 = arith.constant 0 : index
    %c0_15 = arith.constant 0 : index
    %20 = vector.load %arg5[%c0_13, %c0_14, %c0_15] : memref<6x1x256xf32, #tpu.memory_space<vmem>>, vector<1x1x256xf32>
    %21 = vector.shape_cast %20 : vector<1x1x256xf32> to vector<1x256xf32>
    %22 = vector.broadcast %21 : vector<1x256xf32> to vector<16x256xf32>
    %23 = arith.addf %19, %22 : vector<16x256xf32>
    %24 = arith.truncf %23 : vector<16x256xf32> to vector<16x256xbf16>
    %cst_16 = arith.constant 0.000000e+00 : bf16
    %25 = vector.broadcast %cst_16 : bf16 to vector<16x256xbf16>
    %26 = arith.maximumf %24, %25 : vector<16x256xbf16>
    %cst_17 = arith.constant 0.000000e+00 : bf16
    %27 = vector.broadcast %cst_17 : bf16 to vector<16x256xbf16>
    %28 = arith.minimumf %24, %27 : vector<16x256xbf16>
    %29 = math.exp %28 : vector<16x256xbf16>
    %cst_18 = arith.constant 1.000000e+00 : bf16
    %30 = vector.broadcast %cst_18 : bf16 to vector<16x256xbf16>
    %31 = arith.subf %29, %30 : vector<16x256xbf16>
    %cst_19 = arith.constant 1.671880e+00 : bf16
    %32 = vector.broadcast %cst_19 : bf16 to vector<16x256xbf16>
    %33 = arith.mulf %32, %31 : vector<16x256xbf16>
    %34 = arith.addf %26, %33 : vector<16x256xbf16>
    %c1 = arith.constant 1 : index
    %c0_20 = arith.constant 0 : index
    %c0_21 = arith.constant 0 : index
    %35 = vector.load %arg4[%c1, %c0_20, %c0_21] : memref<6x256x256xbf16, #tpu.memory_space<vmem>>, vector<1x256x256xbf16>
    %36 = vector.shape_cast %35 : vector<1x256x256xbf16> to vector<256x256xbf16>
    %cst_22 = arith.constant dense<0.000000e+00> : vector<16x256xf32>
    %37 = tpu.matmul %34, %36, %cst_22 {dimension_numbers = #tpu.dot_dimension_numbers<[1], [0], [0], [1], [0, 0, 1, 1], [], []>} : vector<16x256xbf16>, vector<256x256xbf16>, vector<16x256xf32> -> vector<16x256xf32>
    %c1_23 = arith.constant 1 : index
    %c0_24 = arith.constant 0 : index
    %c0_25 = arith.constant 0 : index
    %38 = vector.load %arg5[%c1_23, %c0_24, %c0_25] : memref<6x1x256xf32, #tpu.memory_space<vmem>>, vector<1x1x256xf32>
    %39 = vector.shape_cast %38 : vector<1x1x256xf32> to vector<1x256xf32>
    %40 = vector.broadcast %39 : vector<1x256xf32> to vector<16x256xf32>
    %41 = arith.addf %37, %40 : vector<16x256xf32>
    %42 = arith.truncf %41 : vector<16x256xf32> to vector<16x256xbf16>
    %cst_26 = arith.constant 0.000000e+00 : bf16
    %43 = vector.broadcast %cst_26 : bf16 to vector<16x256xbf16>
    %44 = arith.maximumf %42, %43 : vector<16x256xbf16>
    %cst_27 = arith.constant 0.000000e+00 : bf16
    %45 = vector.broadcast %cst_27 : bf16 to vector<16x256xbf16>
    %46 = arith.minimumf %42, %45 : vector<16x256xbf16>
    %47 = math.exp %46 : vector<16x256xbf16>
    %cst_28 = arith.constant 1.000000e+00 : bf16
    %48 = vector.broadcast %cst_28 : bf16 to vector<16x256xbf16>
    %49 = arith.subf %47, %48 : vector<16x256xbf16>
    %cst_29 = arith.constant 1.671880e+00 : bf16
    %50 = vector.broadcast %cst_29 : bf16 to vector<16x256xbf16>
    %51 = arith.mulf %50, %49 : vector<16x256xbf16>
    %52 = arith.addf %44, %51 : vector<16x256xbf16>
    %c2 = arith.constant 2 : index
    %c0_30 = arith.constant 0 : index
    %c0_31 = arith.constant 0 : index
    %53 = vector.load %arg4[%c2, %c0_30, %c0_31] : memref<6x256x256xbf16, #tpu.memory_space<vmem>>, vector<1x256x256xbf16>
    %54 = vector.shape_cast %53 : vector<1x256x256xbf16> to vector<256x256xbf16>
    %cst_32 = arith.constant dense<0.000000e+00> : vector<16x256xf32>
    %55 = tpu.matmul %52, %54, %cst_32 {dimension_numbers = #tpu.dot_dimension_numbers<[1], [0], [0], [1], [0, 0, 1, 1], [], []>} : vector<16x256xbf16>, vector<256x256xbf16>, vector<16x256xf32> -> vector<16x256xf32>
    %c2_33 = arith.constant 2 : index
    %c0_34 = arith.constant 0 : index
    %c0_35 = arith.constant 0 : index
    %56 = vector.load %arg5[%c2_33, %c0_34, %c0_35] : memref<6x1x256xf32, #tpu.memory_space<vmem>>, vector<1x1x256xf32>
    %57 = vector.shape_cast %56 : vector<1x1x256xf32> to vector<1x256xf32>
    %58 = vector.broadcast %57 : vector<1x256xf32> to vector<16x256xf32>
    %59 = arith.addf %55, %58 : vector<16x256xf32>
    %60 = arith.truncf %59 : vector<16x256xf32> to vector<16x256xbf16>
    %cst_36 = arith.constant 0.000000e+00 : bf16
    %61 = vector.broadcast %cst_36 : bf16 to vector<16x256xbf16>
    %62 = arith.maximumf %60, %61 : vector<16x256xbf16>
    %cst_37 = arith.constant 0.000000e+00 : bf16
    %63 = vector.broadcast %cst_37 : bf16 to vector<16x256xbf16>
    %64 = arith.minimumf %60, %63 : vector<16x256xbf16>
    %65 = math.exp %64 : vector<16x256xbf16>
    %cst_38 = arith.constant 1.000000e+00 : bf16
    %66 = vector.broadcast %cst_38 : bf16 to vector<16x256xbf16>
    %67 = arith.subf %65, %66 : vector<16x256xbf16>
    %cst_39 = arith.constant 1.671880e+00 : bf16
    %68 = vector.broadcast %cst_39 : bf16 to vector<16x256xbf16>
    %69 = arith.mulf %68, %67 : vector<16x256xbf16>
    %70 = arith.addf %62, %69 : vector<16x256xbf16>
    %c3 = arith.constant 3 : index
    %c0_40 = arith.constant 0 : index
    %c0_41 = arith.constant 0 : index
    %71 = vector.load %arg4[%c3, %c0_40, %c0_41] : memref<6x256x256xbf16, #tpu.memory_space<vmem>>, vector<1x256x256xbf16>
    %72 = vector.shape_cast %71 : vector<1x256x256xbf16> to vector<256x256xbf16>
    %cst_42 = arith.constant dense<0.000000e+00> : vector<16x256xf32>
    %73 = tpu.matmul %70, %72, %cst_42 {dimension_numbers = #tpu.dot_dimension_numbers<[1], [0], [0], [1], [0, 0, 1, 1], [], []>} : vector<16x256xbf16>, vector<256x256xbf16>, vector<16x256xf32> -> vector<16x256xf32>
    %c3_43 = arith.constant 3 : index
    %c0_44 = arith.constant 0 : index
    %c0_45 = arith.constant 0 : index
    %74 = vector.load %arg5[%c3_43, %c0_44, %c0_45] : memref<6x1x256xf32, #tpu.memory_space<vmem>>, vector<1x1x256xf32>
    %75 = vector.shape_cast %74 : vector<1x1x256xf32> to vector<1x256xf32>
    %76 = vector.broadcast %75 : vector<1x256xf32> to vector<16x256xf32>
    %77 = arith.addf %73, %76 : vector<16x256xf32>
    %78 = arith.truncf %77 : vector<16x256xf32> to vector<16x256xbf16>
    %cst_46 = arith.constant 0.000000e+00 : bf16
    %79 = vector.broadcast %cst_46 : bf16 to vector<16x256xbf16>
    %80 = arith.maximumf %78, %79 : vector<16x256xbf16>
    %cst_47 = arith.constant 0.000000e+00 : bf16
    %81 = vector.broadcast %cst_47 : bf16 to vector<16x256xbf16>
    %82 = arith.minimumf %78, %81 : vector<16x256xbf16>
    %83 = math.exp %82 : vector<16x256xbf16>
    %cst_48 = arith.constant 1.000000e+00 : bf16
    %84 = vector.broadcast %cst_48 : bf16 to vector<16x256xbf16>
    %85 = arith.subf %83, %84 : vector<16x256xbf16>
    %cst_49 = arith.constant 1.671880e+00 : bf16
    %86 = vector.broadcast %cst_49 : bf16 to vector<16x256xbf16>
    %87 = arith.mulf %86, %85 : vector<16x256xbf16>
    %88 = arith.addf %80, %87 : vector<16x256xbf16>
    %c4 = arith.constant 4 : index
    %c0_50 = arith.constant 0 : index
    %c0_51 = arith.constant 0 : index
    %89 = vector.load %arg4[%c4, %c0_50, %c0_51] : memref<6x256x256xbf16, #tpu.memory_space<vmem>>, vector<1x256x256xbf16>
    %90 = vector.shape_cast %89 : vector<1x256x256xbf16> to vector<256x256xbf16>
    %cst_52 = arith.constant dense<0.000000e+00> : vector<16x256xf32>
    %91 = tpu.matmul %88, %90, %cst_52 {dimension_numbers = #tpu.dot_dimension_numbers<[1], [0], [0], [1], [0, 0, 1, 1], [], []>} : vector<16x256xbf16>, vector<256x256xbf16>, vector<16x256xf32> -> vector<16x256xf32>
    %c4_53 = arith.constant 4 : index
    %c0_54 = arith.constant 0 : index
    %c0_55 = arith.constant 0 : index
    %92 = vector.load %arg5[%c4_53, %c0_54, %c0_55] : memref<6x1x256xf32, #tpu.memory_space<vmem>>, vector<1x1x256xf32>
    %93 = vector.shape_cast %92 : vector<1x1x256xf32> to vector<1x256xf32>
    %94 = vector.broadcast %93 : vector<1x256xf32> to vector<16x256xf32>
    %95 = arith.addf %91, %94 : vector<16x256xf32>
    %96 = arith.truncf %95 : vector<16x256xf32> to vector<16x256xbf16>
    %cst_56 = arith.constant 0.000000e+00 : bf16
    %97 = vector.broadcast %cst_56 : bf16 to vector<16x256xbf16>
    %98 = arith.maximumf %96, %97 : vector<16x256xbf16>
    %cst_57 = arith.constant 0.000000e+00 : bf16
    %99 = vector.broadcast %cst_57 : bf16 to vector<16x256xbf16>
    %100 = arith.minimumf %96, %99 : vector<16x256xbf16>
    %101 = math.exp %100 : vector<16x256xbf16>
    %cst_58 = arith.constant 1.000000e+00 : bf16
    %102 = vector.broadcast %cst_58 : bf16 to vector<16x256xbf16>
    %103 = arith.subf %101, %102 : vector<16x256xbf16>
    %cst_59 = arith.constant 1.671880e+00 : bf16
    %104 = vector.broadcast %cst_59 : bf16 to vector<16x256xbf16>
    %105 = arith.mulf %104, %103 : vector<16x256xbf16>
    %106 = arith.addf %98, %105 : vector<16x256xbf16>
    %c5 = arith.constant 5 : index
    %c0_60 = arith.constant 0 : index
    %c0_61 = arith.constant 0 : index
    %107 = vector.load %arg4[%c5, %c0_60, %c0_61] : memref<6x256x256xbf16, #tpu.memory_space<vmem>>, vector<1x256x256xbf16>
    %108 = vector.shape_cast %107 : vector<1x256x256xbf16> to vector<256x256xbf16>
    %cst_62 = arith.constant dense<0.000000e+00> : vector<16x256xf32>
    %109 = tpu.matmul %106, %108, %cst_62 {dimension_numbers = #tpu.dot_dimension_numbers<[1], [0], [0], [1], [0, 0, 1, 1], [], []>} : vector<16x256xbf16>, vector<256x256xbf16>, vector<16x256xf32> -> vector<16x256xf32>
    %c5_63 = arith.constant 5 : index
    %c0_64 = arith.constant 0 : index
    %c0_65 = arith.constant 0 : index
    %110 = vector.load %arg5[%c5_63, %c0_64, %c0_65] : memref<6x1x256xf32, #tpu.memory_space<vmem>>, vector<1x1x256xf32>
    %111 = vector.shape_cast %110 : vector<1x1x256xf32> to vector<1x256xf32>
    %112 = vector.broadcast %111 : vector<1x256xf32> to vector<16x256xf32>
    %113 = arith.addf %109, %112 : vector<16x256xf32>
    %114 = arith.truncf %113 : vector<16x256xf32> to vector<16x256xbf16>
    %cst_66 = arith.constant 0.000000e+00 : bf16
    %115 = vector.broadcast %cst_66 : bf16 to vector<16x256xbf16>
    %116 = arith.maximumf %114, %115 : vector<16x256xbf16>
    %cst_67 = arith.constant 0.000000e+00 : bf16
    %117 = vector.broadcast %cst_67 : bf16 to vector<16x256xbf16>
    %118 = arith.minimumf %114, %117 : vector<16x256xbf16>
    %119 = math.exp %118 : vector<16x256xbf16>
    %cst_68 = arith.constant 1.000000e+00 : bf16
    %120 = vector.broadcast %cst_68 : bf16 to vector<16x256xbf16>
    %121 = arith.subf %119, %120 : vector<16x256xbf16>
    %cst_69 = arith.constant 1.671880e+00 : bf16
    %122 = vector.broadcast %cst_69 : bf16 to vector<16x256xbf16>
    %123 = arith.mulf %122, %121 : vector<16x256xbf16>
    %124 = arith.addf %116, %123 : vector<16x256xbf16>
    %c0_70 = arith.constant 0 : index
    %c0_71 = arith.constant 0 : index
    %125 = vector.load %arg6[%c0_70, %c0_71] : memref<1x256xbf16, #tpu.memory_space<vmem>>, vector<1x256xbf16>
    %cst_72 = arith.constant dense<0.000000e+00> : vector<1x16xf32>
    %126 = tpu.matmul %125, %124, %cst_72 {dimension_numbers = #tpu.dot_dimension_numbers<[1], [1], [0], [0], [0, 0, 1, 0], [], []>} : vector<1x256xbf16>, vector<16x256xbf16>, vector<1x16xf32> -> vector<1x16xf32>
    %c0_73 = arith.constant 0 : index
    %c0_74 = arith.constant 0 : index
    %127 = memref.load %arg7[%c0_73, %c0_74] : memref<1x1xf32, #tpu.memory_space<smem>>
    %128 = vector.broadcast %127 : f32 to vector<1x16xf32>
    %129 = arith.addf %126, %128 : vector<1x16xf32>
    %c0_75 = arith.constant 0 : index
    %c0_76 = arith.constant 0 : index
    %130 = vector.load %arg8[%c0_75, %c0_76] : memref<1x16xf32, #tpu.memory_space<vmem>>, vector<1x16xf32>
    tpu.vector_store %arg8[%c0_75, %c0_76], %129 {strides = array<i32>} : memref<1x16xf32, #tpu.memory_space<vmem>>, vector<1x16xf32>,
    return
  }
  func.func @transform_0(%arg0: i32) -> (i32, i32) {
    %c0_i32 = arith.constant 0 : i32
    %c0_i32_0 = arith.constant 0 : i32
    return %arg0, %c0_i32 : i32, i32
  }
  func.func @transform_1(%arg0: i32) -> (i32, i32) {
    %c0_i32 = arith.constant 0 : i32
    %c0_i32_0 = arith.constant 0 : i32
    %c0_i32_1 = arith.constant 0 : i32
    return %c0_i32, %c0_i32_0 : i32, i32
  }
  func.func @transform_2(%arg0: i32) -> (i32, i32) {
    %c0_i32 = arith.constant 0 : i32
    %c0_i32_0 = arith.constant 0 : i32
    %c0_i32_1 = arith.constant 0 : i32
    return %c0_i32, %c0_i32_0 : i32, i32
  }
  func.func @transform_3(%arg0: i32) -> (i32, i32, i32) {
    %c0_i32 = arith.constant 0 : i32
    %c0_i32_0 = arith.constant 0 : i32
    %c0_i32_1 = arith.constant 0 : i32
    %c0_i32_2 = arith.constant 0 : i32
    return %c0_i32, %c0_i32_0, %c0_i32_1 : i32, i32, i32
  }
  func.func @transform_4(%arg0: i32) -> (i32, i32, i32) {
    %c0_i32 = arith.constant 0 : i32
    %c0_i32_0 = arith.constant 0 : i32
    %c0_i32_1 = arith.constant 0 : i32
    %c0_i32_2 = arith.constant 0 : i32
    return %c0_i32, %c0_i32_0, %c0_i32_1 : i32, i32, i32
  }
  func.func @transform_5(%arg0: i32) -> (i32, i32) {
    %c0_i32 = arith.constant 0 : i32
    %c0_i32_0 = arith.constant 0 : i32
    %c0_i32_1 = arith.constant 0 : i32
    return %c0_i32, %c0_i32_0 : i32, i32
  }
  func.func @transform_6(%arg0: i32) -> (i32, i32) {
    %c0_i32 = arith.constant 0 : i32
    %c0_i32_0 = arith.constant 0 : i32
    %c0_i32_1 = arith.constant 0 : i32
    return %c0_i32, %c0_i32_0 : i32, i32
  }
  func.func @transform_7(%arg0: i32) -> (i32, i32) {
    %c0_i32 = arith.constant 0 : i32
    %c0_i32_0 = arith.constant 0 : i32
    return %c0_i32, %arg0 : i32, i32
  }
}

</mosaic_0001>

<llo_original>
// kernel: qnet_forward.1
$region0: #{qnet_forward.1}
  #allocation0 [shape = 'u32[]', space=smem, size = 0x4, offset = 0x4, fixed_abs, tag = 'smem constant byte address 0x4 - core index']
  #allocation1 [shape = 'u32[72,128]{1,0:T(1,128)}', space=vmem, size = 0x9000, scoped, tag = 'internal scratch']
  #allocation2 [shape = 'f32[1,1]{1,0:T(1,128)S(6)}', space=smem, size = 0x200, scoped, tag = 'scoped memory for qnet_forward.1']
  %s0 = inlined_call_operand.vmem [shape: bf16[16,20], index: 0, kind: input, shape index: {}]
  %s1 = inlined_call_operand.vmem [shape: bf16[20,256], index: 1, kind: input, shape index: {}]
  %s2 = inlined_call_operand.vmem [shape: f32[1,256], index: 2, kind: input, shape index: {}]
  %s3 = inlined_call_operand.hbm [shape: bf16[6,256,256], index: 3, kind: input, shape index: {}]
  %s4 = inlined_call_operand.vmem [shape: f32[6,1,256], index: 4, kind: input, shape index: {}]
  %s5 = inlined_call_operand.vmem [shape: bf16[1,256], index: 5, kind: input, shape index: {}]
  %s6 = inlined_call_operand.<no memory space> [shape: f32[1,1], index: 6, kind: input, shape index: {}]
  %s7 = inlined_call_operand.vmem [shape: f32[1,16], index: 7, kind: output, shape index: {}]
  %s8 = sld [smem:[#allocation0]]
  $region42: #{qnet_forward.1} parent=0
    _
  %s10 = ssub.s32 1, %s8
  %s11 = scalar_select 0, %s10, %s8
  %12 = sst [smem:[#allocation2]] %s6
  $region1: #{qnet_forward.1} parent=0
    #allocation3 [shape = 'u8[786432]{0}', space=vmem, size = 0xc0000, scoped, tag = 'input window, operand 3, single buffered']
    #allocation4 [shape = 's32[1]{0}', space=sflag, size = 0x4, scoped, tag = 'scoped memory for qnet_forward.1']
    %13 = vsyncpa [#allocation4], 0
    // Predicated region
    $region2: #{qnet_forward.1} parent=1 // pred_check
      _
    $region3: #{qnet_forward.1} parent=1 // pred_check_branch
      %15 = sbr.rel (0) target = $region5
    $region4: #{qnet_forward.1} parent=1 // pred_region
      _
    $region5: #{qnet_forward.1} parent=1 // pred_fallthru
      _
    // Predicated region
    $region6: #{qnet_forward.1} parent=1 // pred_check
      _
    $region7: #{qnet_forward.1} parent=1 // pred_check_branch
      %17 = sbr.rel (0) target = $region9
    $region8: #{qnet_forward.1} parent=1 // pred_region
      _
    $region9: #{qnet_forward.1} parent=1 // pred_fallthru
      _
    // Predicated region
    $region10: #{qnet_forward.1} parent=1 // pred_check
      _
    $region11: #{qnet_forward.1} parent=1 // pred_check_branch
      %19 = sbr.rel (0) target = $region13
    $region12: #{qnet_forward.1} parent=1 // pred_region
      _
    $region13: #{qnet_forward.1} parent=1 // pred_fallthru
      _
    // Predicated region
    $region14: #{qnet_forward.1} parent=1 // pred_check
      _
    $region15: #{qnet_forward.1} parent=1 // pred_check_branch
      %21 = sbr.rel (0) target = $region17
    $region16: #{qnet_forward.1} parent=1 // pred_region
      %23 = vsyncadd [#allocation4], 0
      %s24 = sshll.u32 %s3, 4
      %s25 = int_to_ptr.hbm [resolvable:$true] %s24
      %s26 = sshll.u32 [#allocation3], 4
      %s27 = int_to_ptr.vmem [resolvable:$true] %s26
      %32 = dma.hbm_to_vmem [thread:$0]  %s25, 24576, %s27, [#allocation4], 128, 128, 8
    $region17: #{qnet_forward.1} parent=1 // pred_fallthru
      _
    // Predicated region
    $region18: #{qnet_forward.1} parent=1 // pred_check
      _
    $region19: #{qnet_forward.1} parent=1 // pred_check_branch
      %34 = sbr.rel (0) target = $region21
    $region20: #{qnet_forward.1} parent=1 // pred_region
      _
    $region21: #{qnet_forward.1} parent=1 // pred_fallthru
      _
    // Predicated region
    $region22: #{qnet_forward.1} parent=1 // pred_check
      _
    $region23: #{qnet_forward.1} parent=1 // pred_check_branch
      %36 = sbr.rel (0) target = $region25
    $region24: #{qnet_forward.1} parent=1 // pred_region
      _
    $region25: #{qnet_forward.1} parent=1 // pred_fallthru
      _
    // Predicated region
    $region26: #{qnet_forward.1} parent=1 // pred_check
      _
    $region27: #{qnet_forward.1} parent=1 // pred_check_branch
      %38 = sbr.rel (0) target = $region29
    $region28: #{qnet_forward.1} parent=1 // pred_region
      _
    $region29: #{qnet_forward.1} parent=1 // pred_fallthru
      _
    // Predicated region
    $region30: #{qnet_forward.1} parent=1 // pred_check
      _
    $region31: #{qnet_forward.1} parent=1 // pred_check_branch
      %40 = sbr.rel (0) target = $region33
    $region32: #{qnet_forward.1} parent=1 // pred_region
      %42 = dma.done [#allocation4], 24576
    $region33: #{qnet_forward.1} parent=1 // pred_fallthru
      _
    %v44 = vld [vmem:[%s0] sm:$0xf]
    %v45 = vld [vmem:[%s0 + $0x4] sm:$0xf]
    %v46 = vld [vmem:[%s1] sm:$0xff]
    %v47 = vld [vmem:[%s1 + $0x8] sm:$0xff]
    %v48 = vld [vmem:[%s1 + $0x10] sm:$0x33]
    %v49 = vld [vmem:[%s2] sm:$0x3]
    %v51 = vperm.slane %v49, 0
    %v52 = vperm.slane %v49, 1
    %v57 = vunpack.c.l.b16 %v44
    %v58 = vunpack.c.l.b16 %v45
    %v59 = vpack.c.b16 %v58, %v57
    %v63 = vunpack.c.l.b16 %v46
    %v64 = vunpack.c.h.b16 %v46
    %v65 = vunpack.c.l.b16 %v47
    %v66 = vunpack.c.h.b16 %v47
    %v67 = vunpack.c.l.b16 %v48
    %v68 = vunpack.c.h.b16 %v48
    %v69 = vpack.c.b16 %v65, %v63
    %v70 = vpack.c.b16 %v66, %v64
    %v71 = vpack.c.b16 %v67, %v67
    %v72 = vpack.c.b16 %v68, %v68
    %vm75 = vcmask 162816
    %v77 = vsel %vm75, %v59, 0
    %vm79 = vcmask 1041408
    %v81 = vsel %vm79, %v71, 0
    %v84 = vsel %vm79, %v72, 0
    %86 = vmatpush.bf16.msra.mxu0 0
    %87 = vmatpush.bf16.msra.mxu0 0
    %88 = vmatpush.bf16.msra.mxu0 0
    %89 = vmatpush.bf16.msra.mxu0 0
    %90 = vmatpush.bf16.msra.mxu0 0
    %91 = vmatpush.bf16.msra.mxu0 0
    %92 = vmatpush.bf16.msra.mxu0 %v81
    %93 = vmatpush.bf16.msra.mxu0 %v69
    %94 = vmatmul.bf16.gmra.mxu0 %v77
    %v95 = vpop.f32.mrf.mxu0
    %v96 = vadd.f32 %v51, %v95
    %v97 = vpop.f32.mrf.mxu0
    %v98 = vadd.f32 %v51, %v97
    %99 = vdwg.mxu0
    %100 = vmatpush.bf16.msra.mxu0 0
    %101 = vmatpush.bf16.msra.mxu0 0
    %102 = vmatpush.bf16.msra.mxu0 0
    %103 = vmatpush.bf16.msra.mxu0 0
    %104 = vmatpush.bf16.msra.mxu0 0
    %105 = vmatpush.bf16.msra.mxu0 0
    %106 = vmatpush.bf16.msra.mxu0 %v84
    %107 = vmatpush.bf16.msra.mxu0 %v70
    %108 = vmatmul.bf16.gmra.mxu0 %v77
    %v109 = vpop.f32.mrf.mxu0
    %v110 = vadd.f32 %v52, %v109
    %v111 = vpop.f32.mrf.mxu0
    %v112 = vadd.f32 %v52, %v111
    %113 = vdwg.mxu0
    %v114 = vpack.c.bf16 %v110, %v96
    %v115 = vpack.c.bf16 %v112, %v98
    %v116 = vunpack.c.l.bf16 %v114
    %v117 = vunpack.c.h.bf16 %v114
    %v118 = vunpack.c.l.bf16 %v115
    %v119 = vunpack.c.h.bf16 %v115
    %v120 = vmax.f32 %v116, 0.0
    %v121 = vmax.f32 %v117, 0.0
    %v122 = vmax.f32 %v118, 0.0
    %v123 = vmax.f32 %v119, 0.0
    %v124 = vpack.c.bf16 %v121, %v120
    %v125 = vpack.c.bf16 %v123, %v122
    %v126 = vmin.f32 %v116, 0.0
    %v127 = vmin.f32 %v117, 0.0
    %v128 = vmin.f32 %v118, 0.0
    %v129 = vmin.f32 %v119, 0.0
    %v130 = vpack.c.bf16 %v127, %v126
    %v131 = vpack.c.bf16 %v129, %v128
    %v132 = vunpack.c.l.bf16 %v130
    %v133 = vunpack.c.h.bf16 %v130
    %v134 = vunpack.c.l.bf16 %v131
    %v135 = vunpack.c.h.bf16 %v131
    %v136 = vmul.f32 %v132, 1.442695
    %v137 = vpow.pop %v136
    %v138 = vmul.f32 %v133, 1.442695
    %v139 = vpow.pop %v138
    %v140 = vmul.f32 %v134, 1.442695
    %v141 = vpow.pop %v140
    %v142 = vmul.f32 %v135, 1.442695
    %v143 = vpow.pop %v142
    %v144 = vpack.c.bf16 %v139, %v137
    %v145 = vpack.c.bf16 %v143, %v141
    %v146 = vunpack.c.l.bf16 %v144
    %v147 = vunpack.c.h.bf16 %v144
    %v148 = vunpack.c.l.bf16 %v145
    %v149 = vunpack.c.h.bf16 %v145
    %v150 = vsub.f32 %v146, 1.0
    %v151 = vsub.f32 %v147, 1.0
    %v152 = vsub.f32 %v148, 1.0
    %v153 = vsub.f32 %v149, 1.0
    %v154 = vpack.c.bf16 %v151, %v150
    %v155 = vpack.c.bf16 %v153, %v152
    %v156 = vunpack.c.l.bf16 %v154
    %v157 = vunpack.c.h.bf16 %v154
    %v158 = vunpack.c.l.bf16 %v155
    %v159 = vunpack.c.h.bf16 %v155
    %v160 = vmul.f32 %v156, 1.671875
    %v161 = vmul.f32 %v157, 1.671875
    %v162 = vmul.f32 %v158, 1.671875
    %v163 = vmul.f32 %v159, 1.671875
    %v164 = vpack.c.bf16 %v161, %v160
    %v165 = vpack.c.bf16 %v163, %v162
    %v166 = vunpack.c.l.bf16 %v124
    %v167 = vunpack.c.h.bf16 %v124
    %v168 = vunpack.c.l.bf16 %v125
    %v169 = vunpack.c.h.bf16 %v125
    %v170 = vunpack.c.l.bf16 %v164
    %v171 = vunpack.c.h.bf16 %v164
    %v172 = vunpack.c.l.bf16 %v165
    %v173 = vunpack.c.h.bf16 %v165
    %v174 = vadd.f32 %v166, %v170
    %v175 = vadd.f32 %v167, %v171
    %v176 = vadd.f32 %v168, %v172
    %v177 = vadd.f32 %v169, %v173
    %v178 = vpack.c.bf16 %v176, %v174
    %v179 = vpack.c.bf16 %v177, %v175
    %v180 = vld [vmem:[#allocation3] sm:$0xff]
    %v181 = vld [vmem:[#allocation3 + $0x8] sm:$0xff]
    %v182 = vld [vmem:[#allocation3 + $0x10] sm:$0xff]
    %v183 = vld [vmem:[#allocation3 + $0x18] sm:$0xff]
    %v184 = vld [vmem:[#allocation3 + $0x20] sm:$0xff]
    %v185 = vld [vmem:[#allocation3 + $0x28] sm:$0xff]
    %v186 = vld [vmem:[#allocation3 + $0x30] sm:$0xff]
    %v187 = vld [vmem:[#allocation3 + $0x38] sm:$0xff]
    %v188 = vld [vmem:[#allocation3 + $0x40] sm:$0xff]
    %v189 = vld [vmem:[#allocation3 + $0x48] sm:$0xff]
    %v190 = vld [vmem:[#allocation3 + $0x50] sm:$0xff]
    %v191 = vld [vmem:[#allocation3 + $0x58] sm:$0xff]
    %v192 = vld [vmem:[#allocation3 + $0x60] sm:$0xff]
    %v193 = vld [vmem:[#allocation3 + $0x68] sm:$0xff]
    %v194 = vld [vmem:[#allocation3 + $0x70] sm:$0xff]
    %v195 = vld [vmem:[#allocation3 + $0x78] sm:$0xff]
    %v196 = vld [vmem:[#allocation3 + $0x80] sm:$0xff]
    %v197 = vld [vmem:[#allocation3 + $0x88] sm:$0xff]
    %v198 = vld [vmem:[#allocation3 + $0x90] sm:$0xff]
    %v199 = vld [vmem:[#allocation3 + $0x98] sm:$0xff]
    %v200 = vld [vmem:[#allocation3 + $0xa0] sm:$0xff]
    %v201 = vld [vmem:[#allocation3 + $0xa8] sm:$0xff]
    %v202 = vld [vmem:[#allocation3 + $0xb0] sm:$0xff]
    %v203 = vld [vmem:[#allocation3 + $0xb8] sm:$0xff]
    %v204 = vld [vmem:[#allocation3 + $0xc0] sm:$0xff]
    %v205 = vld [vmem:[#allocation3 + $0xc8] sm:$0xff]
    %v206 = vld [vmem:[#allocation3 + $0xd0] sm:$0xff]
    %v207 = vld [vmem:[#allocation3 + $0xd8] sm:$0xff]
    %v208 = vld [vmem:[#allocation3 + $0xe0] sm:$0xff]
    %v209 = vld [vmem:[#allocation3 + $0xe8] sm:$0xff]
    %v210 = vld [vmem:[#allocation3 + $0xf0] sm:$0xff]
    %v211 = vld [vmem:[#allocation3 + $0xf8] sm:$0xff]
    %v212 = vld [vmem:[%s4] sm:$0x3]
    %v214 = vperm.slane %v212, 0
    %v215 = vperm.slane %v212, 1
    %v250 = vunpack.c.l.b16 %v180
    %v251 = vunpack.c.h.b16 %v180
    %v252 = vunpack.c.l.b16 %v181
    %v253 = vunpack.c.h.b16 %v181
    %v254 = vunpack.c.l.b16 %v182
    %v255 = vunpack.c.h.b16 %v182
    %v256 = vunpack.c.l.b16 %v183
    %v257 = vunpack.c.h.b16 %v183
    %v258 = vunpack.c.l.b16 %v184
    %v259 = vunpack.c.h.b16 %v184
    %v260 = vunpack.c.l.b16 %v185
    %v261 = vunpack.c.h.b16 %v185
    %v262 = vunpack.c.l.b16 %v186
    %v263 = vunpack.c.h.b16 %v186
    %v264 = vunpack.c.l.b16 %v187
    %v265 = vunpack.c.h.b16 %v187
    %v266 = vunpack.c.l.b16 %v188
    %v267 = vunpack.c.h.b16 %v188
    %v268 = vunpack.c.l.b16 %v189
    %v269 = vunpack.c.h.b16 %v189
    %v270 = vunpack.c.l.b16 %v190
    %v271 = vunpack.c.h.b16 %v190
    %v272 = vunpack.c.l.b16 %v191
    %v273 = vunpack.c.h.b16 %v191
    %v274 = vunpack.c.l.b16 %v192
    %v275 = vunpack.c.h.b16 %v192
    %v276 = vunpack.c.l.b16 %v193
    %v277 = vunpack.c.h.b16 %v193
    %v278 = vunpack.c.l.b16 %v194
    %v279 = vunpack.c.h.b16 %v194
    %v280 = vunpack.c.l.b16 %v195
    %v281 = vunpack.c.h.b16 %v195
    %v282 = vunpack.c.l.b16 %v196
    %v283 = vunpack.c.h.b16 %v196
    %v284 = vunpack.c.l.b16 %v197
    %v285 = vunpack.c.h.b16 %v197
    %v286 = vunpack.c.l.b16 %v198
    %v287 = vunpack.c.h.b16 %v198
    %v288 = vunpack.c.l.b16 %v199
    %v289 = vunpack.c.h.b16 %v199
    %v290 = vunpack.c.l.b16 %v200
    %v291 = vunpack.c.h.b16 %v200
    %v292 = vunpack.c.l.b16 %v201
    %v293 = vunpack.c.h.b16 %v201
    %v294 = vunpack.c.l.b16 %v202
    %v295 = vunpack.c.h.b16 %v202
    %v296 = vunpack.c.l.b16 %v203
    %v297 = vunpack.c.h.b16 %v203
    %v298 = vunpack.c.l.b16 %v204
    %v299 = vunpack.c.h.b16 %v204
    %v300 = vunpack.c.l.b16 %v205
    %v301 = vunpack.c.h.b16 %v205
    %v302 = vunpack.c.l.b16 %v206
    %v303 = vunpack.c.h.b16 %v206
    %v304 = vunpack.c.l.b16 %v207
    %v305 = vunpack.c.h.b16 %v207
    %v306 = vunpack.c.l.b16 %v208
    %v307 = vunpack.c.h.b16 %v208
    %v308 = vunpack.c.l.b16 %v209
    %v309 = vunpack.c.h.b16 %v209
    %v310 = vunpack.c.l.b16 %v210
    %v311 = vunpack.c.h.b16 %v210
    %v312 = vunpack.c.l.b16 %v211
    %v313 = vunpack.c.h.b16 %v211
    %v314 = vpack.c.b16 %v252, %v250
    %v315 = vpack.c.b16 %v253, %v251
    %v316 = vpack.c.b16 %v256, %v254
    %v317 = vpack.c.b16 %v257, %v255
    %v318 = vpack.c.b16 %v260, %v258
    %v319 = vpack.c.b16 %v261, %v259
    %v320 = vpack.c.b16 %v264, %v262
    %v321 = vpack.c.b16 %v265, %v263
    %v322 = vpack.c.b16 %v268, %v266
    %v323 = vpack.c.b16 %v269, %v267
    %v324 = vpack.c.b16 %v272, %v270
    %v325 = vpack.c.b16 %v273, %v271
    %v326 = vpack.c.b16 %v276, %v274
    %v327 = vpack.c.b16 %v277, %v275
    %v328 = vpack.c.b16 %v280, %v278
    %v329 = vpack.c.b16 %v281, %v279
    %v330 = vpack.c.b16 %v284, %v282
    %v331 = vpack.c.b16 %v285, %v283
    %v332 = vpack.c.b16 %v288, %v286
    %v333 = vpack.c.b16 %v289, %v287
    %v334 = vpack.c.b16 %v292, %v290
    %v335 = vpack.c.b16 %v293, %v291
    %v336 = vpack.c.b16 %v296, %v294
    %v337 = vpack.c.b16 %v297, %v295
    %v338 = vpack.c.b16 %v300, %v298
    %v339 = vpack.c.b16 %v301, %v299
    %v340 = vpack.c.b16 %v304, %v302
    %v341 = vpack.c.b16 %v305, %v303
    %v342 = vpack.c.b16 %v308, %v306
    %v343 = vpack.c.b16 %v309, %v307
    %v344 = vpack.c.b16 %v312, %v310
    %v345 = vpack.c.b16 %v313, %v311
    %378 = vmatpush.bf16.msra.mxu0 %v328
    %379 = vmatpush.bf16.msra.mxu0 %v326
    %380 = vmatpush.bf16.msra.mxu0 %v324
    %381 = vmatpush.bf16.msra.mxu0 %v322
    %382 = vmatpush.bf16.msra.mxu0 %v320
    %383 = vmatpush.bf16.msra.mxu0 %v318
    %384 = vmatpush.bf16.msra.mxu0 %v316
    %385 = vmatpush.bf16.msra.mxu0 %v314
    %386 = vmatmul.bf16.gmra.mxu0 %v178
    %v387 = vpop.f32.mrf.mxu0
    %v388 = vadd.f32 %v214, %v387
    %v389 = vpop.f32.mrf.mxu0
    %v390 = vadd.f32 %v214, %v389
    %391 = vdwg.mxu0
    %392 = vmatpush.bf16.msra.mxu0 %v344
    %393 = vmatpush.bf16.msra.mxu0 %v342
    %394 = vmatpush.bf16.msra.mxu0 %v340
    %395 = vmatpush.bf16.msra.mxu0 %v338
    %396 = vmatpush.bf16.msra.mxu0 %v336
    %397 = vmatpush.bf16.msra.mxu0 %v334
    %398 = vmatpush.bf16.msra.mxu0 %v332
    %399 = vmatpush.bf16.msra.mxu0 %v330
    %400 = vmatmul.bf16.gmra.mxu0 %v179
    %v401 = vpop.f32.mrf.mxu0
    %v402 = vadd.f32 %v388, %v401
    %v403 = vpop.f32.mrf.mxu0
    %v404 = vadd.f32 %v390, %v403
    %405 = vdwg.mxu0
    %406 = vmatpush.bf16.msra.mxu0 %v329
    %407 = vmatpush.bf16.msra.mxu0 %v327
    %408 = vmatpush.bf16.msra.mxu0 %v325
    %409 = vmatpush.bf16.msra.mxu0 %v323
    %410 = vmatpush.bf16.msra.mxu0 %v321
    %411 = vmatpush.bf16.msra.mxu0 %v319
    %412 = vmatpush.bf16.msra.mxu0 %v317
    %413 = vmatpush.bf16.msra.mxu0 %v315
    %414 = vmatmul.bf16.gmra.mxu0 %v178
    %v415 = vpop.f32.mrf.mxu0
    %v416 = vadd.f32 %v215, %v415
    %v417 = vpop.f32.mrf.mxu0
    %v418 = vadd.f32 %v215, %v417
    %419 = vdwg.mxu0
    %420 = vmatpush.bf16.msra.mxu0 %v345
    %421 = vmatpush.bf16.msra.mxu0 %v343
    %422 = vmatpush.bf16.msra.mxu0 %v341
    %423 = vmatpush.bf16.msra.mxu0 %v339
    %424 = vmatpush.bf16.msra.mxu0 %v337
    %425 = vmatpush.bf16.msra.mxu0 %v335
    %426 = vmatpush.bf16.msra.mxu0 %v333
    %427 = vmatpush.bf16.msra.mxu0 %v331
    %428 = vmatmul.bf16.gmra.mxu0 %v179
    %v429 = vpop.f32.mrf.mxu0
    %v430 = vadd.f32 %v416, %v429
    %v431 = vpop.f32.mrf.mxu0
    %v432 = vadd.f32 %v418, %v431
    %433 = vdwg.mxu0
    %v434 = vpack.c.bf16 %v430, %v402
    %v435 = vpack.c.bf16 %v432, %v404
    %v436 = vunpack.c.l.bf16 %v434
    %v437 = vunpack.c.h.bf16 %v434
    %v438 = vunpack.c.l.bf16 %v435
    %v439 = vunpack.c.h.bf16 %v435
    %v440 = vmax.f32 %v436, 0.0
    %v441 = vmax.f32 %v437, 0.0
    %v442 = vmax.f32 %v438, 0.0
    %v443 = vmax.f32 %v439, 0.0
    %v444 = vpack.c.bf16 %v441, %v440
    %v445 = vpack.c.bf16 %v443, %v442
    %v446 = vmin.f32 %v436, 0.0
    %v447 = vmin.f32 %v437, 0.0
    %v448 = vmin.f32 %v438, 0.0
    %v449 = vmin.f32 %v439, 0.0
    %v450 = vpack.c.bf16 %v447, %v446
    %v451 = vpack.c.bf16 %v449, %v448
    %v452 = vunpack.c.l.bf16 %v450
    %v453 = vunpack.c.h.bf16 %v450
    %v454 = vunpack.c.l.bf16 %v451
    %v455 = vunpack.c.h.bf16 %v451
    %v456 = vmul.f32 %v452, 1.442695
    %v457 = vpow.pop %v456
    %v458 = vmul.f32 %v453, 1.442695
    %v459 = vpow.pop %v458
    %v460 = vmul.f32 %v454, 1.442695
    %v461 = vpow.pop %v460
    %v462 = vmul.f32 %v455, 1.442695
    %v463 = vpow.pop %v462
    %v464 = vpack.c.bf16 %v459, %v457
    %v465 = vpack.c.bf16 %v463, %v461
    %v466 = vunpack.c.l.bf16 %v464
    %v467 = vunpack.c.h.bf16 %v464
    %v468 = vunpack.c.l.bf16 %v465
    %v469 = vunpack.c.h.bf16 %v465
    %v470 = vsub.f32 %v466, 1.0
    %v471 = vsub.f32 %v467, 1.0
    %v472 = vsub.f32 %v468, 1.0
    %v473 = vsub.f32 %v469, 1.0
    %v474 = vpack.c.bf16 %v471, %v470
    %v475 = vpack.c.bf16 %v473, %v472
    %v476 = vunpack.c.l.bf16 %v474
    %v477 = vunpack.c.h.bf16 %v474
    %v478 = vunpack.c.l.bf16 %v475
    %v479 = vunpack.c.h.bf16 %v475
    %v480 = vmul.f32 %v476, 1.671875
    %v481 = vmul.f32 %v477, 1.671875
    %v482 = vmul.f32 %v478, 1.671875
    %v483 = vmul.f32 %v479, 1.671875
    %v484 = vpack.c.bf16 %v481, %v480
    %v485 = vpack.c.bf16 %v483, %v482
    %v486 = vunpack.c.l.bf16 %v444
    %v487 = vunpack.c.h.bf16 %v444
    %v488 = vunpack.c.l.bf16 %v445
    %v489 = vunpack.c.h.bf16 %v445
    %v490 = vunpack.c.l.bf16 %v484
    %v491 = vunpack.c.h.bf16 %v484
    %v492 = vunpack.c.l.bf16 %v485
    %v493 = vunpack.c.h.bf16 %v485
    %v494 = vadd.f32 %v486, %v490
    %v495 = vadd.f32 %v487, %v491
    %v496 = vadd.f32 %v488, %v492
    %v497 = vadd.f32 %v489, %v493
    %v498 = vpack.c.bf16 %v496, %v494
    %v499 = vpack.c.bf16 %v497, %v495
    %s500 = scalar_lea.vmem [#allocation3], 256
    %v501 = vld [vmem:[%s500] sm:$0xff]
    %v502 = vld [vmem:[%s500 + $0x8] sm:$0xff]
    %v503 = vld [vmem:[%s500 + $0x10] sm:$0xff]
    %v504 = vld [vmem:[%s500 + $0x18] sm:$0xff]
    %v505 = vld [vmem:[%s500 + $0x20] sm:$0xff]
    %v506 = vld [vmem:[%s500 + $0x28] sm:$0xff]
    %v507 = vld [vmem:[%s500 + $0x30] sm:$0xff]
    %v508 = vld [vmem:[%s500 + $0x38] sm:$0xff]
    %v509 = vld [vmem:[%s500 + $0x40] sm:$0xff]
    %v510 = vld [vmem:[%s500 + $0x48] sm:$0xff]
    %v511 = vld [vmem:[%s500 + $0x50] sm:$0xff]
    %v512 = vld [vmem:[%s500 + $0x58] sm:$0xff]
    %v513 = vld [vmem:[%s500 + $0x60] sm:$0xff]
    %v514 = vld [vmem:[%s500 + $0x68] sm:$0xff]
    %v515 = vld [vmem:[%s500 + $0x70] sm:$0xff]
    %v516 = vld [vmem:[%s500 + $0x78] sm:$0xff]
    %v517 = vld [vmem:[%s500 + $0x80] sm:$0xff]
    %v518 = vld [vmem:[%s500 + $0x88] sm:$0xff]
    %v519 = vld [vmem:[%s500 + $0x90] sm:$0xff]
    %v520 = vld [vmem:[%s500 + $0x98] sm:$0xff]
    %v521 = vld [vmem:[%s500 + $0xa0] sm:$0xff]
    %v522 = vld [vmem:[%s500 + $0xa8] sm:$0xff]
    %v523 = vld [vmem:[%s500 + $0xb0] sm:$0xff]
    %v524 = vld [vmem:[%s500 + $0xb8] sm:$0xff]
    %v525 = vld [vmem:[%s500 + $0xc0] sm:$0xff]
    %v526 = vld [vmem:[%s500 + $0xc8] sm:$0xff]
    %v527 = vld [vmem:[%s500 + $0xd0] sm:$0xff]
    %v528 = vld [vmem:[%s500 + $0xd8] sm:$0xff]
    %v529 = vld [vmem:[%s500 + $0xe0] sm:$0xff]
    %v530 = vld [vmem:[%s500 + $0xe8] sm:$0xff]
    %v531 = vld [vmem:[%s500 + $0xf0] sm:$0xff]
    %v532 = vld [vmem:[%s500 + $0xf8] sm:$0xff]
    %s533 = scalar_lea.vmem %s4, 2
    %v534 = vld [vmem:[%s533] sm:$0x3]
    %v536 = vperm.slane %v534, 0
    %v537 = vperm.slane %v534, 1
    %v572 = vunpack.c.l.b16 %v501
    %v573 = vunpack.c.h.b16 %v501
    %v574 = vunpack.c.l.b16 %v502
    %v575 = vunpack.c.h.b16 %v502
    %v576 = vunpack.c.l.b16 %v503
    %v577 = vunpack.c.h.b16 %v503
    %v578 = vunpack.c.l.b16 %v504
    %v579 = vunpack.c.h.b16 %v504
    %v580 = vunpack.c.l.b16 %v505
    %v581 = vunpack.c.h.b16 %v505
    %v582 = vunpack.c.l.b16 %v506
    %v583 = vunpack.c.h.b16 %v506
    %v584 = vunpack.c.l.b16 %v507
    %v585 = vunpack.c.h.b16 %v507
    %v586 = vunpack.c.l.b16 %v508
    %v587 = vunpack.c.h.b16 %v508
    %v588 = vunpack.c.l.b16 %v509
    %v589 = vunpack.c.h.b16 %v509
    %v590 = vunpack.c.l.b16 %v510
    %v591 = vunpack.c.h.b16 %v510
    %v592 = vunpack.c.l.b16 %v511
    %v593 = vunpack.c.h.b16 %v511
    %v594 = vunpack.c.l.b16 %v512
    %v595 = vunpack.c.h.b16 %v512
    %v596 = vunpack.c.l.b16 %v513
    %v597 = vunpack.c.h.b16 %v513
    %v598 = vunpack.c.l.b16 %v514
    %v599 = vunpack.c.h.b16 %v514
    %v600 = vunpack.c.l.b16 %v515
    %v601 = vunpack.c.h.b16 %v515
    %v602 = vunpack.c.l.b16 %v516
    %v603 = vunpack.c.h.b16 %v516
    %v604 = vunpack.c.l.b16 %v517
    %v605 = vunpack.c.h.b16 %v517
    %v606 = vunpack.c.l.b16 %v518
    %v607 = vunpack.c.h.b16 %v518
    %v608 = vunpack.c.l.b16 %v519
    %v609 = vunpack.c.h.b16 %v519
    %v610 = vunpack.c.l.b16 %v520
    %v611 = vunpack.c.h.b16 %v520
    %v612 = vunpack.c.l.b16 %v521
    %v613 = vunpack.c.h.b16 %v521
    %v614 = vunpack.c.l.b16 %v522
    %v615 = vunpack.c.h.b16 %v522
    %v616 = vunpack.c.l.b16 %v523
    %v617 = vunpack.c.h.b16 %v523
    %v618 = vunpack.c.l.b16 %v524
    %v619 = vunpack.c.h.b16 %v524
    %v620 = vunpack.c.l.b16 %v525
    %v621 = vunpack.c.h.b16 %v525
    %v622 = vunpack.c.l.b16 %v526
    %v623 = vunpack.c.h.b16 %v526
    %v624 = vunpack.c.l.b16 %v527
    %v625 = vunpack.c.h.b16 %v527
    %v626 = vunpack.c.l.b16 %v528
    %v627 = vunpack.c.h.b16 %v528
    %v628 = vunpack.c.l.b16 %v529
    %v629 = vunpack.c.h.b16 %v529
    %v630 = vunpack.c.l.b16 %v530
    %v631 = vunpack.c.h.b16 %v530
    %v632 = vunpack.c.l.b16 %v531
    %v633 = vunpack.c.h.b16 %v531
    %v634 = vunpack.c.l.b16 %v532
    %v635 = vunpack.c.h.b16 %v532
    %v636 = vpack.c.b16 %v574, %v572
    %v637 = vpack.c.b16 %v575, %v573
    %v638 = vpack.c.b16 %v578, %v576
    %v639 = vpack.c.b16 %v579, %v577
    %v640 = vpack.c.b16 %v582, %v580
    %v641 = vpack.c.b16 %v583, %v581
    %v642 = vpack.c.b16 %v586, %v584
    %v643 = vpack.c.b16 %v587, %v585
    %v644 = vpack.c.b16 %v590, %v588
    %v645 = vpack.c.b16 %v591, %v589
    %v646 = vpack.c.b16 %v594, %v592
    %v647 = vpack.c.b16 %v595, %v593
    %v648 = vpack.c.b16 %v598, %v596
    %v649 = vpack.c.b16 %v599, %v597
    %v650 = vpack.c.b16 %v602, %v600
    %v651 = vpack.c.b16 %v603, %v601
    %v652 = vpack.c.b16 %v606, %v604
    %v653 = vpack.c.b16 %v607, %v605
    %v654 = vpack.c.b16 %v610, %v608
    %v655 = vpack.c.b16 %v611, %v609
    %v656 = vpack.c.b16 %v614, %v612
    %v657 = vpack.c.b16 %v615, %v613
    %v658 = vpack.c.b16 %v618, %v616
    %v659 = vpack.c.b16 %v619, %v617
    %v660 = vpack.c.b16 %v622, %v620
    %v661 = vpack.c.b16 %v623, %v621
    %v662 = vpack.c.b16 %v626, %v624
    %v663 = vpack.c.b16 %v627, %v625
    %v664 = vpack.c.b16 %v630, %v628
    %v665 = vpack.c.b16 %v631, %v629
    %v666 = vpack.c.b16 %v634, %v632
    %v667 = vpack.c.b16 %v635, %v633
    %700 = vmatpush.bf16.msra.mxu0 %v650
    %701 = vmatpush.bf16.msra.mxu0 %v648
    %702 = vmatpush.bf16.msra.mxu0 %v646
    %703 = vmatpush.bf16.msra.mxu0 %v644
    %704 = vmatpush.bf16.msra.mxu0 %v642
    %705 = vmatpush.bf16.msra.mxu0 %v640
    %706 = vmatpush.bf16.msra.mxu0 %v638
    %707 = vmatpush.bf16.msra.mxu0 %v636
    %708 = vmatmul.bf16.gmra.mxu0 %v498
    %v709 = vpop.f32.mrf.mxu0
    %v710 = vadd.f32 %v536, %v709
    %v711 = vpop.f32.mrf.mxu0
    %v712 = vadd.f32 %v536, %v711
    %713 = vdwg.mxu0
    %714 = vmatpush.bf16.msra.mxu0 %v666
    %715 = vmatpush.bf16.msra.mxu0 %v664
    %716 = vmatpush.bf16.msra.mxu0 %v662
    %717 = vmatpush.bf16.msra.mxu0 %v660
    %718 = vmatpush.bf16.msra.mxu0 %v658
    %719 = vmatpush.bf16.msra.mxu0 %v656
    %720 = vmatpush.bf16.msra.mxu0 %v654
    %721 = vmatpush.bf16.msra.mxu0 %v652
    %722 = vmatmul.bf16.gmra.mxu0 %v499
    %v723 = vpop.f32.mrf.mxu0
    %v724 = vadd.f32 %v710, %v723
    %v725 = vpop.f32.mrf.mxu0
    %v726 = vadd.f32 %v712, %v725
    %727 = vdwg.mxu0
    %728 = vmatpush.bf16.msra.mxu0 %v651
    %729 = vmatpush.bf16.msra.mxu0 %v649
    %730 = vmatpush.bf16.msra.mxu0 %v647
    %731 = vmatpush.bf16.msra.mxu0 %v645
    %732 = vmatpush.bf16.msra.mxu0 %v643
    %733 = vmatpush.bf16.msra.mxu0 %v641
    %734 = vmatpush.bf16.msra.mxu0 %v639
    %735 = vmatpush.bf16.msra.mxu0 %v637
    %736 = vmatmul.bf16.gmra.mxu0 %v498
    %v737 = vpop.f32.mrf.mxu0
    %v738 = vadd.f32 %v537, %v737
    %v739 = vpop.f32.mrf.mxu0
    %v740 = vadd.f32 %v537, %v739
    %741 = vdwg.mxu0
    %742 = vmatpush.bf16.msra.mxu0 %v667
    %743 = vmatpush.bf16.msra.mxu0 %v665
    %744 = vmatpush.bf16.msra.mxu0 %v663
    %745 = vmatpush.bf16.msra.mxu0 %v661
    %746 = vmatpush.bf16.msra.mxu0 %v659
    %747 = vmatpush.bf16.msra.mxu0 %v657
    %748 = vmatpush.bf16.msra.mxu0 %v655
    %749 = vmatpush.bf16.msra.mxu0 %v653
    %750 = vmatmul.bf16.gmra.mxu0 %v499
    %v751 = vpop.f32.mrf.mxu0
    %v752 = vadd.f32 %v738, %v751
    %v753 = vpop.f32.mrf.mxu0
    %v754 = vadd.f32 %v740, %v753
    %755 = vdwg.mxu0
    %v756 = vpack.c.bf16 %v752, %v724
    %v757 = vpack.c.bf16 %v754, %v726
    %v758 = vunpack.c.l.bf16 %v756
    %v759 = vunpack.c.h.bf16 %v756
    %v760 = vunpack.c.l.bf16 %v757
    %v761 = vunpack.c.h.bf16 %v757
    %v762 = vmax.f32 %v758, 0.0
    %v763 = vmax.f32 %v759, 0.0
    %v764 = vmax.f32 %v760, 0.0
    %v765 = vmax.f32 %v761, 0.0
    %v766 = vpack.c.bf16 %v763, %v762
    %v767 = vpack.c.bf16 %v765, %v764
    %v768 = vmin.f32 %v758, 0.0
    %v769 = vmin.f32 %v759, 0.0
    %v770 = vmin.f32 %v760, 0.0
    %v771 = vmin.f32 %v761, 0.0
    %v772 = vpack.c.bf16 %v769, %v768
    %v773 = vpack.c.bf16 %v771, %v770
    %v774 = vunpack.c.l.bf16 %v772
    %v775 = vunpack.c.h.bf16 %v772
    %v776 = vunpack.c.l.bf16 %v773
    %v777 = vunpack.c.h.bf16 %v773
    %v778 = vmul.f32 %v774, 1.442695
    %v779 = vpow.pop %v778
    %v780 = vmul.f32 %v775, 1.442695
    %v781 = vpow.pop %v780
    %v782 = vmul.f32 %v776, 1.442695
    %v783 = vpow.pop %v782
    %v784 = vmul.f32 %v777, 1.442695
    %v785 = vpow.pop %v784
    %v786 = vpack.c.bf16 %v781, %v779
    %v787 = vpack.c.bf16 %v785, %v783
    %v788 = vunpack.c.l.bf16 %v786
    %v789 = vunpack.c.h.bf16 %v786
    %v790 = vunpack.c.l.bf16 %v787
    %v791 = vunpack.c.h.bf16 %v787
    %v792 = vsub.f32 %v788, 1.0
    %v793 = vsub.f32 %v789, 1.0
    %v794 = vsub.f32 %v790, 1.0
    %v795 = vsub.f32 %v791, 1.0
    %v796 = vpack.c.bf16 %v793, %v792
    %v797 = vpack.c.bf16 %v795, %v794
    %v798 = vunpack.c.l.bf16 %v796
    %v799 = vunpack.c.h.bf16 %v796
    %v800 = vunpack.c.l.bf16 %v797
    %v801 = vunpack.c.h.bf16 %v797
    %v802 = vmul.f32 %v798, 1.671875
    %v803 = vmul.f32 %v799, 1.671875
    %v804 = vmul.f32 %v800, 1.671875
    %v805 = vmul.f32 %v801, 1.671875
    %v806 = vpack.c.bf16 %v803, %v802
    %v807 = vpack.c.bf16 %v805, %v804
    %v808 = vunpack.c.l.bf16 %v766
    %v809 = vunpack.c.h.bf16 %v766
    %v810 = vunpack.c.l.bf16 %v767
    %v811 = vunpack.c.h.bf16 %v767
    %v812 = vunpack.c.l.bf16 %v806
    %v813 = vunpack.c.h.bf16 %v806
    %v814 = vunpack.c.l.bf16 %v807
    %v815 = vunpack.c.h.bf16 %v807
    %v816 = vadd.f32 %v808, %v812
    %v817 = vadd.f32 %v809, %v813
    %v818 = vadd.f32 %v810, %v814
    %v819 = vadd.f32 %v811, %v815
    %v820 = vpack.c.bf16 %v818, %v816
    %v821 = vpack.c.bf16 %v819, %v817
    %s822 = scalar_lea.vmem [#allocation3], 512
    %v823 = vld [vmem:[%s822] sm:$0xff]
    %v824 = vld [vmem:[%s822 + $0x8] sm:$0xff]
    %v825 = vld [vmem:[%s822 + $0x10] sm:$0xff]
    %v826 = vld [vmem:[%s822 + $0x18] sm:$0xff]
    %v827 = vld [vmem:[%s822 + $0x20] sm:$0xff]
    %v828 = vld [vmem:[%s822 + $0x28] sm:$0xff]
    %v829 = vld [vmem:[%s822 + $0x30] sm:$0xff]
    %v830 = vld [vmem:[%s822 + $0x38] sm:$0xff]
    %v831 = vld [vmem:[%s822 + $0x40] sm:$0xff]
    %v832 = vld [vmem:[%s822 + $0x48] sm:$0xff]
    %v833 = vld [vmem:[%s822 + $0x50] sm:$0xff]
    %v834 = vld [vmem:[%s822 + $0x58] sm:$0xff]
    %v835 = vld [vmem:[%s822 + $0x60] sm:$0xff]
    %v836 = vld [vmem:[%s822 + $0x68] sm:$0xff]
    %v837 = vld [vmem:[%s822 + $0x70] sm:$0xff]
    %v838 = vld [vmem:[%s822 + $0x78] sm:$0xff]
    %v839 = vld [vmem:[%s822 + $0x80] sm:$0xff]
    %v840 = vld [vmem:[%s822 + $0x88] sm:$0xff]
    %v841 = vld [vmem:[%s822 + $0x90] sm:$0xff]
    %v842 = vld [vmem:[%s822 + $0x98] sm:$0xff]
    %v843 = vld [vmem:[%s822 + $0xa0] sm:$0xff]
    %v844 = vld [vmem:[%s822 + $0xa8] sm:$0xff]
    %v845 = vld [vmem:[%s822 + $0xb0] sm:$0xff]
    %v846 = vld [vmem:[%s822 + $0xb8] sm:$0xff]
    %v847 = vld [vmem:[%s822 + $0xc0] sm:$0xff]
    %v848 = vld [vmem:[%s822 + $0xc8] sm:$0xff]
    %v849 = vld [vmem:[%s822 + $0xd0] sm:$0xff]
    %v850 = vld [vmem:[%s822 + $0xd8] sm:$0xff]
    %v851 = vld [vmem:[%s822 + $0xe0] sm:$0xff]
    %v852 = vld [vmem:[%s822 + $0xe8] sm:$0xff]
    %v853 = vld [vmem:[%s822 + $0xf0] sm:$0xff]
    %v854 = vld [vmem:[%s822 + $0xf8] sm:$0xff]
    %s855 = scalar_lea.vmem %s4, 4
    %v856 = vld [vmem:[%s855] sm:$0x3]
    %v858 = vperm.slane %v856, 0
    %v859 = vperm.slane %v856, 1
    %v894 = vunpack.c.l.b16 %v823
    %v895 = vunpack.c.h.b16 %v823
    %v896 = vunpack.c.l.b16 %v824
    %v897 = vunpack.c.h.b16 %v824
    %v898 = vunpack.c.l.b16 %v825
    %v899 = vunpack.c.h.b16 %v825
    %v900 = vunpack.c.l.b16 %v826
    %v901 = vunpack.c.h.b16 %v826
    %v902 = vunpack.c.l.b16 %v827
    %v903 = vunpack.c.h.b16 %v827
    %v904 = vunpack.c.l.b16 %v828
    %v905 = vunpack.c.h.b16 %v828
    %v906 = vunpack.c.l.b16 %v829
    %v907 = vunpack.c.h.b16 %v829
    %v908 = vunpack.c.l.b16 %v830
    %v909 = vunpack.c.h.b16 %v830
    %v910 = vunpack.c.l.b16 %v831
    %v911 = vunpack.c.h.b16 %v831
    %v912 = vunpack.c.l.b16 %v832
    %v913 = vunpack.c.h.b16 %v832
    %v914 = vunpack.c.l.b16 %v833
    %v915 = vunpack.c.h.b16 %v833
    %v916 = vunpack.c.l.b16 %v834
    %v917 = vunpack.c.h.b16 %v834
    %v918 = vunpack.c.l.b16 %v835
    %v919 = vunpack.c.h.b16 %v835
    %v920 = vunpack.c.l.b16 %v836
    %v921 = vunpack.c.h.b16 %v836
    %v922 = vunpack.c.l.b16 %v837
    %v923 = vunpack.c.h.b16 %v837
    %v924 = vunpack.c.l.b16 %v838
    %v925 = vunpack.c.h.b16 %v838
    %v926 = vunpack.c.l.b16 %v839
    %v927 = vunpack.c.h.b16 %v839
    %v928 = vunpack.c.l.b16 %v840
    %v929 = vunpack.c.h.b16 %v840
    %v930 = vunpack.c.l.b16 %v841
    %v931 = vunpack.c.h.b16 %v841
    %v932 = vunpack.c.l.b16 %v842
    %v933 = vunpack.c.h.b16 %v842
    %v934 = vunpack.c.l.b16 %v843
    %v935 = vunpack.c.h.b16 %v843
    %v936 = vunpack.c.l.b16 %v844
    %v937 = vunpack.c.h.b16 %v844
    %v938 = vunpack.c.l.b16 %v845
    %v939 = vunpack.c.h.b16 %v845
    %v940 = vunpack.c.l.b16 %v846
    %v941 = vunpack.c.h.b16 %v846
    %v942 = vunpack.c.l.b16 %v847
    %v943 = vunpack.c.h.b16 %v847
    %v944 = vunpack.c.l.b16 %v848
    %v945 = vunpack.c.h.b16 %v848
    %v946 = vunpack.c.l.b16 %v849
    %v947 = vunpack.c.h.b16 %v849
    %v948 = vunpack.c.l.b16 %v850
    %v949 = vunpack.c.h.b16 %v850
    %v950 = vunpack.c.l.b16 %v851
    %v951 = vunpack.c.h.b16 %v851
    %v952 = vunpack.c.l.b16 %v852
    %v953 = vunpack.c.h.b16 %v852
    %v954 = vunpack.c.l.b16 %v853
    %v955 = vunpack.c.h.b16 %v853
    %v956 = vunpack.c.l.b16 %v854
    %v957 = vunpack.c.h.b16 %v854
    %v958 = vpack.c.b16 %v896, %v894
    %v959 = vpack.c.b16 %v897, %v895
    %v960 = vpack.c.b16 %v900, %v898
    %v961 = vpack.c.b16 %v901, %v899
    %v962 = vpack.c.b16 %v904, %v902
    %v963 = vpack.c.b16 %v905, %v903
    %v964 = vpack.c.b16 %v908, %v906
    %v965 = vpack.c.b16 %v909, %v907
    %v966 = vpack.c.b16 %v912, %v910
    %v967 = vpack.c.b16 %v913, %v911
    %v968 = vpack.c.b16 %v916, %v914
    %v969 = vpack.c.b16 %v917, %v915
    %v970 = vpack.c.b16 %v920, %v918
    %v971 = vpack.c.b16 %v921, %v919
    %v972 = vpack.c.b16 %v924, %v922
    %v973 = vpack.c.b16 %v925, %v923
    %v974 = vpack.c.b16 %v928, %v926
    %v975 = vpack.c.b16 %v929, %v927
    %v976 = vpack.c.b16 %v932, %v930
    %v977 = vpack.c.b16 %v933, %v931
    %v978 = vpack.c.b16 %v936, %v934
    %v979 = vpack.c.b16 %v937, %v935
    %v980 = vpack.c.b16 %v940, %v938
    %v981 = vpack.c.b16 %v941, %v939
    %v982 = vpack.c.b16 %v944, %v942
    %v983 = vpack.c.b16 %v945, %v943
    %v984 = vpack.c.b16 %v948, %v946
    %v985 = vpack.c.b16 %v949, %v947
    %v986 = vpack.c.b16 %v952, %v950
    %v987 = vpack.c.b16 %v953, %v951
    %v988 = vpack.c.b16 %v956, %v954
    %v989 = vpack.c.b16 %v957, %v955
    %1022 = vmatpush.bf16.msra.mxu0 %v972
    %1023 = vmatpush.bf16.msra.mxu0 %v970
    %1024 = vmatpush.bf16.msra.mxu0 %v968
    %1025 = vmatpush.bf16.msra.mxu0 %v966
    %1026 = vmatpush.bf16.msra.mxu0 %v964
    %1027 = vmatpush.bf16.msra.mxu0 %v962
    %1028 = vmatpush.bf16.msra.mxu0 %v960
    %1029 = vmatpush.bf16.msra.mxu0 %v958
    %1030 = vmatmul.bf16.gmra.mxu0 %v820
    %v1031 = vpop.f32.mrf.mxu0
    %v1032 = vadd.f32 %v858, %v1031
    %v1033 = vpop.f32.mrf.mxu0
    %v1034 = vadd.f32 %v858, %v1033
    %1035 = vdwg.mxu0
    %1036 = vmatpush.bf16.msra.mxu0 %v988
    %1037 = vmatpush.bf16.msra.mxu0 %v986
    %1038 = vmatpush.bf16.msra.mxu0 %v984
    %1039 = vmatpush.bf16.msra.mxu0 %v982
    %1040 = vmatpush.bf16.msra.mxu0 %v980
    %1041 = vmatpush.bf16.msra.mxu0 %v978
    %1042 = vmatpush.bf16.msra.mxu0 %v976
    %1043 = vmatpush.bf16.msra.mxu0 %v974
    %1044 = vmatmul.bf16.gmra.mxu0 %v821
    %v1045 = vpop.f32.mrf.mxu0
    %v1046 = vadd.f32 %v1032, %v1045
    %v1047 = vpop.f32.mrf.mxu0
    %v1048 = vadd.f32 %v1034, %v1047
    %1049 = vdwg.mxu0
    %1050 = vmatpush.bf16.msra.mxu0 %v973
    %1051 = vmatpush.bf16.msra.mxu0 %v971
    %1052 = vmatpush.bf16.msra.mxu0 %v969
    %1053 = vmatpush.bf16.msra.mxu0 %v967
    %1054 = vmatpush.bf16.msra.mxu0 %v965
    %1055 = vmatpush.bf16.msra.mxu0 %v963
    %1056 = vmatpush.bf16.msra.mxu0 %v961
    %1057 = vmatpush.bf16.msra.mxu0 %v959
    %1058 = vmatmul.bf16.gmra.mxu0 %v820
    %v1059 = vpop.f32.mrf.mxu0
    %v1060 = vadd.f32 %v859, %v1059
    %v1061 = vpop.f32.mrf.mxu0
    %v1062 = vadd.f32 %v859, %v1061
    %1063 = vdwg.mxu0
    %1064 = vmatpush.bf16.msra.mxu0 %v989
    %1065 = vmatpush.bf16.msra.mxu0 %v987
    %1066 = vmatpush.bf16.msra.mxu0 %v985
    %1067 = vmatpush.bf16.msra.mxu0 %v983
    %1068 = vmatpush.bf16.msra.mxu0 %v981
    %1069 = vmatpush.bf16.msra.mxu0 %v979
    %1070 = vmatpush.bf16.msra.mxu0 %v977
    %1071 = vmatpush.bf16.msra.mxu0 %v975
    %1072 = vmatmul.bf16.gmra.mxu0 %v821
    %v1073 = vpop.f32.mrf.mxu0
    %v1074 = vadd.f32 %v1060, %v1073
    %v1075 = vpop.f32.mrf.mxu0
    %v1076 = vadd.f32 %v1062, %v1075
    %1077 = vdwg.mxu0
    %v1078 = vpack.c.bf16 %v1074, %v1046
    %v1079 = vpack.c.bf16 %v1076, %v1048
    %v1080 = vunpack.c.l.bf16 %v1078
    %v1081 = vunpack.c.h.bf16 %v1078
    %v1082 = vunpack.c.l.bf16 %v1079
    %v1083 = vunpack.c.h.bf16 %v1079
    %v1084 = vmax.f32 %v1080, 0.0
    %v1085 = vmax.f32 %v1081, 0.0
    %v1086 = vmax.f32 %v1082, 0.0
    %v1087 = vmax.f32 %v1083, 0.0
    %v1088 = vpack.c.bf16 %v1085, %v1084
    %v1089 = vpack.c.bf16 %v1087, %v1086
    %v1090 = vmin.f32 %v1080, 0.0
    %v1091 = vmin.f32 %v1081, 0.0
    %v1092 = vmin.f32 %v1082, 0.0
    %v1093 = vmin.f32 %v1083, 0.0
    %v1094 = vpack.c.bf16 %v1091, %v1090
    %v1095 = vpack.c.bf16 %v1093, %v1092
    %v1096 = vunpack.c.l.bf16 %v1094
    %v1097 = vunpack.c.h.bf16 %v1094
    %v1098 = vunpack.c.l.bf16 %v1095
    %v1099 = vunpack.c.h.bf16 %v1095
    %v1100 = vmul.f32 %v1096, 1.442695
    %v1101 = vpow.pop %v1100
    %v1102 = vmul.f32 %v1097, 1.442695
    %v1103 = vpow.pop %v1102
    %v1104 = vmul.f32 %v1098, 1.442695
    %v1105 = vpow.pop %v1104
    %v1106 = vmul.f32 %v1099, 1.442695
    %v1107 = vpow.pop %v1106
    %v1108 = vpack.c.bf16 %v1103, %v1101
    %v1109 = vpack.c.bf16 %v1107, %v1105
    %v1110 = vunpack.c.l.bf16 %v1108
    %v1111 = vunpack.c.h.bf16 %v1108
    %v1112 = vunpack.c.l.bf16 %v1109
    %v1113 = vunpack.c.h.bf16 %v1109
    %v1114 = vsub.f32 %v1110, 1.0
    %v1115 = vsub.f32 %v1111, 1.0
    %v1116 = vsub.f32 %v1112, 1.0
    %v1117 = vsub.f32 %v1113, 1.0
    %v1118 = vpack.c.bf16 %v1115, %v1114
    %v1119 = vpack.c.bf16 %v1117, %v1116
    %v1120 = vunpack.c.l.bf16 %v1118
    %v1121 = vunpack.c.h.bf16 %v1118
    %v1122 = vunpack.c.l.bf16 %v1119
    %v1123 = vunpack.c.h.bf16 %v1119
    %v1124 = vmul.f32 %v1120, 1.671875
    %v1125 = vmul.f32 %v1121, 1.671875
    %v1126 = vmul.f32 %v1122, 1.671875
    %v1127 = vmul.f32 %v1123, 1.671875
    %v1128 = vpack.c.bf16 %v1125, %v1124
    %v1129 = vpack.c.bf16 %v1127, %v1126
    %v1130 = vunpack.c.l.bf16 %v1088
    %v1131 = vunpack.c.h.bf16 %v1088
    %v1132 = vunpack.c.l.bf16 %v1089
    %v1133 = vunpack.c.h.bf16 %v1089
    %v1134 = vunpack.c.l.bf16 %v1128
    %v1135 = vunpack.c.h.bf16 %v1128
    %v1136 = vunpack.c.l.bf16 %v1129
    %v1137 = vunpack.c.h.bf16 %v1129
    %v1138 = vadd.f32 %v1130, %v1134
    %v1139 = vadd.f32 %v1131, %v1135
    %v1140 = vadd.f32 %v1132, %v1136
    %v1141 = vadd.f32 %v1133, %v1137
    %v1142 = vpack.c.bf16 %v1140, %v1138
    %v1143 = vpack.c.bf16 %v1141, %v1139
    %s1144 = scalar_lea.vmem [#allocation3], 768
    %v1145 = vld [vmem:[%s1144] sm:$0xff]
    %v1146 = vld [vmem:[%s1144 + $0x8] sm:$0xff]
    %v1147 = vld [vmem:[%s1144 + $0x10] sm:$0xff]
    %v1148 = vld [vmem:[%s1144 + $0x18] sm:$0xff]
    %v1149 = vld [vmem:[%s1144 + $0x20] sm:$0xff]
    %v1150 = vld [vmem:[%s1144 + $0x28] sm:$0xff]
    %v1151 = vld [vmem:[%s1144 + $0x30] sm:$0xff]
    %v1152 = vld [vmem:[%s1144 + $0x38] sm:$0xff]
    %v1153 = vld [vmem:[%s1144 + $0x40] sm:$0xff]
    %v1154 = vld [vmem:[%s1144 + $0x48] sm:$0xff]
    %v1155 = vld [vmem:[%s1144 + $0x50] sm:$0xff]
    %v1156 = vld [vmem:[%s1144 + $0x58] sm:$0xff]
    %v1157 = vld [vmem:[%s1144 + $0x60] sm:$0xff]
    %v1158 = vld [vmem:[%s1144 + $0x68] sm:$0xff]
    %v1159 = vld [vmem:[%s1144 + $0x70] sm:$0xff]
    %v1160 = vld [vmem:[%s1144 + $0x78] sm:$0xff]
    %v1161 = vld [vmem:[%s1144 + $0x80] sm:$0xff]
    %v1162 = vld [vmem:[%s1144 + $0x88] sm:$0xff]
    %v1163 = vld [vmem:[%s1144 + $0x90] sm:$0xff]
    %v1164 = vld [vmem:[%s1144 + $0x98] sm:$0xff]
    %v1165 = vld [vmem:[%s1144 + $0xa0] sm:$0xff]
    %v1166 = vld [vmem:[%s1144 + $0xa8] sm:$0xff]
    %v1167 = vld [vmem:[%s1144 + $0xb0] sm:$0xff]
    %v1168 = vld [vmem:[%s1144 + $0xb8] sm:$0xff]
    %v1169 = vld [vmem:[%s1144 + $0xc0] sm:$0xff]
    %v1170 = vld [vmem:[%s1144 + $0xc8] sm:$0xff]
    %v1171 = vld [vmem:[%s1144 + $0xd0] sm:$0xff]
    %v1172 = vld [vmem:[%s1144 + $0xd8] sm:$0xff]
    %v1173 = vld [vmem:[%s1144 + $0xe0] sm:$0xff]
    %v1174 = vld [vmem:[%s1144 + $0xe8] sm:$0xff]
    %v1175 = vld [vmem:[%s1144 + $0xf0] sm:$0xff]
    %v1176 = vld [vmem:[%s1144 + $0xf8] sm:$0xff]
    %s1177 = scalar_lea.vmem %s4, 6
    %v1178 = vld [vmem:[%s1177] sm:$0x3]
    %v1180 = vperm.slane %v1178, 0
    %v1181 = vperm.slane %v1178, 1
    %v1216 = vunpack.c.l.b16 %v1145
    %v1217 = vunpack.c.h.b16 %v1145
    %v1218 = vunpack.c.l.b16 %v1146
    %v1219 = vunpack.c.h.b16 %v1146
    %v1220 = vunpack.c.l.b16 %v1147
    %v1221 = vunpack.c.h.b16 %v1147
    %v1222 = vunpack.c.l.b16 %v1148
    %v1223 = vunpack.c.h.b16 %v1148
    %v1224 = vunpack.c.l.b16 %v1149
    %v1225 = vunpack.c.h.b16 %v1149
    %v1226 = vunpack.c.l.b16 %v1150
    %v1227 = vunpack.c.h.b16 %v1150
    %v1228 = vunpack.c.l.b16 %v1151
    %v1229 = vunpack.c.h.b16 %v1151
    %v1230 = vunpack.c.l.b16 %v1152
    %v1231 = vunpack.c.h.b16 %v1152
    %v1232 = vunpack.c.l.b16 %v1153
    %v1233 = vunpack.c.h.b16 %v1153
    %v1234 = vunpack.c.l.b16 %v1154
    %v1235 = vunpack.c.h.b16 %v1154
    %v1236 = vunpack.c.l.b16 %v1155
    %v1237 = vunpack.c.h.b16 %v1155
    %v1238 = vunpack.c.l.b16 %v1156
    %v1239 = vunpack.c.h.b16 %v1156
    %v1240 = vunpack.c.l.b16 %v1157
    %v1241 = vunpack.c.h.b16 %v1157
    %v1242 = vunpack.c.l.b16 %v1158
    %v1243 = vunpack.c.h.b16 %v1158
    %v1244 = vunpack.c.l.b16 %v1159
    %v1245 = vunpack.c.h.b16 %v1159
    %v1246 = vunpack.c.l.b16 %v1160
    %v1247 = vunpack.c.h.b16 %v1160
    %v1248 = vunpack.c.l.b16 %v1161
    %v1249 = vunpack.c.h.b16 %v1161
    %v1250 = vunpack.c.l.b16 %v1162
    %v1251 = vunpack.c.h.b16 %v1162
    %v1252 = vunpack.c.l.b16 %v1163
    %v1253 = vunpack.c.h.b16 %v1163
    %v1254 = vunpack.c.l.b16 %v1164
    %v1255 = vunpack.c.h.b16 %v1164
    %v1256 = vunpack.c.l.b16 %v1165
    %v1257 = vunpack.c.h.b16 %v1165
    %v1258 = vunpack.c.l.b16 %v1166
    %v1259 = vunpack.c.h.b16 %v1166
    %v1260 = vunpack.c.l.b16 %v1167
    %v1261 = vunpack.c.h.b16 %v1167
    %v1262 = vunpack.c.l.b16 %v1168
    %v1263 = vunpack.c.h.b16 %v1168
    %v1264 = vunpack.c.l.b16 %v1169
    %v1265 = vunpack.c.h.b16 %v1169
    %v1266 = vunpack.c.l.b16 %v1170
    %v1267 = vunpack.c.h.b16 %v1170
    %v1268 = vunpack.c.l.b16 %v1171
    %v1269 = vunpack.c.h.b16 %v1171
    %v1270 = vunpack.c.l.b16 %v1172
    %v1271 = vunpack.c.h.b16 %v1172
    %v1272 = vunpack.c.l.b16 %v1173
    %v1273 = vunpack.c.h.b16 %v1173
    %v1274 = vunpack.c.l.b16 %v1174
    %v1275 = vunpack.c.h.b16 %v1174
    %v1276 = vunpack.c.l.b16 %v1175
    %v1277 = vunpack.c.h.b16 %v1175
    %v1278 = vunpack.c.l.b16 %v1176
    %v1279 = vunpack.c.h.b16 %v1176
    %v1280 = vpack.c.b16 %v1218, %v1216
    %v1281 = vpack.c.b16 %v1219, %v1217
    %v1282 = vpack.c.b16 %v1222, %v1220
    %v1283 = vpack.c.b16 %v1223, %v1221
    %v1284 = vpack.c.b16 %v1226, %v1224
    %v1285 = vpack.c.b16 %v1227, %v1225
    %v1286 = vpack.c.b16 %v1230, %v1228
    %v1287 = vpack.c.b16 %v1231, %v1229
    %v1288 = vpack.c.b16 %v1234, %v1232
    %v1289 = vpack.c.b16 %v1235, %v1233
    %v1290 = vpack.c.b16 %v1238, %v1236
    %v1291 = vpack.c.b16 %v1239, %v1237
    %v1292 = vpack.c.b16 %v1242, %v1240
    %v1293 = vpack.c.b16 %v1243, %v1241
    %v1294 = vpack.c.b16 %v1246, %v1244
    %v1295 = vpack.c.b16 %v1247, %v1245
    %v1296 = vpack.c.b16 %v1250, %v1248
    %v1297 = vpack.c.b16 %v1251, %v1249
    %v1298 = vpack.c.b16 %v1254, %v1252
    %v1299 = vpack.c.b16 %v1255, %v1253
    %v1300 = vpack.c.b16 %v1258, %v1256
    %v1301 = vpack.c.b16 %v1259, %v1257
    %v1302 = vpack.c.b16 %v1262, %v1260
    %v1303 = vpack.c.b16 %v1263, %v1261
    %v1304 = vpack.c.b16 %v1266, %v1264
    %v1305 = vpack.c.b16 %v1267, %v1265
    %v1306 = vpack.c.b16 %v1270, %v1268
    %v1307 = vpack.c.b16 %v1271, %v1269
    %v1308 = vpack.c.b16 %v1274, %v1272
    %v1309 = vpack.c.b16 %v1275, %v1273
    %v1310 = vpack.c.b16 %v1278, %v1276
    %v1311 = vpack.c.b16 %v1279, %v1277
    %1344 = vmatpush.bf16.msra.mxu0 %v1294
    %1345 = vmatpush.bf16.msra.mxu0 %v1292
    %1346 = vmatpush.bf16.msra.mxu0 %v1290
    %1347 = vmatpush.bf16.msra.mxu0 %v1288
    %1348 = vmatpush.bf16.msra.mxu0 %v1286
    %1349 = vmatpush.bf16.msra.mxu0 %v1284
    %1350 = vmatpush.bf16.msra.mxu0 %v1282
    %1351 = vmatpush.bf16.msra.mxu0 %v1280
    %1352 = vmatmul.bf16.gmra.mxu0 %v1142
    %v1353 = vpop.f32.mrf.mxu0
    %v1354 = vadd.f32 %v1180, %v1353
    %v1355 = vpop.f32.mrf.mxu0
    %v1356 = vadd.f32 %v1180, %v1355
    %1357 = vdwg.mxu0
    %1358 = vmatpush.bf16.msra.mxu0 %v1310
    %1359 = vmatpush.bf16.msra.mxu0 %v1308
    %1360 = vmatpush.bf16.msra.mxu0 %v1306
    %1361 = vmatpush.bf16.msra.mxu0 %v1304
    %1362 = vmatpush.bf16.msra.mxu0 %v1302
    %1363 = vmatpush.bf16.msra.mxu0 %v1300
    %1364 = vmatpush.bf16.msra.mxu0 %v1298
    %1365 = vmatpush.bf16.msra.mxu0 %v1296
    %1366 = vmatmul.bf16.gmra.mxu0 %v1143
    %v1367 = vpop.f32.mrf.mxu0
    %v1368 = vadd.f32 %v1354, %v1367
    %v1369 = vpop.f32.mrf.mxu0
    %v1370 = vadd.f32 %v1356, %v1369
    %1371 = vdwg.mxu0
    %1372 = vmatpush.bf16.msra.mxu0 %v1295
    %1373 = vmatpush.bf16.msra.mxu0 %v1293
    %1374 = vmatpush.bf16.msra.mxu0 %v1291
    %1375 = vmatpush.bf16.msra.mxu0 %v1289
    %1376 = vmatpush.bf16.msra.mxu0 %v1287
    %1377 = vmatpush.bf16.msra.mxu0 %v1285
    %1378 = vmatpush.bf16.msra.mxu0 %v1283
    %1379 = vmatpush.bf16.msra.mxu0 %v1281
    %1380 = vmatmul.bf16.gmra.mxu0 %v1142
    %v1381 = vpop.f32.mrf.mxu0
    %v1382 = vadd.f32 %v1181, %v1381
    %v1383 = vpop.f32.mrf.mxu0
    %v1384 = vadd.f32 %v1181, %v1383
    %1385 = vdwg.mxu0
    %1386 = vmatpush.bf16.msra.mxu0 %v1311
    %1387 = vmatpush.bf16.msra.mxu0 %v1309
    %1388 = vmatpush.bf16.msra.mxu0 %v1307
    %1389 = vmatpush.bf16.msra.mxu0 %v1305
    %1390 = vmatpush.bf16.msra.mxu0 %v1303
    %1391 = vmatpush.bf16.msra.mxu0 %v1301
    %1392 = vmatpush.bf16.msra.mxu0 %v1299
    %1393 = vmatpush.bf16.msra.mxu0 %v1297
    %1394 = vmatmul.bf16.gmra.mxu0 %v1143
    %v1395 = vpop.f32.mrf.mxu0
    %v1396 = vadd.f32 %v1382, %v1395
    %v1397 = vpop.f32.mrf.mxu0
    %v1398 = vadd.f32 %v1384, %v1397
    %1399 = vdwg.mxu0
    %v1400 = vpack.c.bf16 %v1396, %v1368
    %v1401 = vpack.c.bf16 %v1398, %v1370
    %v1402 = vunpack.c.l.bf16 %v1400
    %v1403 = vunpack.c.h.bf16 %v1400
    %v1404 = vunpack.c.l.bf16 %v1401
    %v1405 = vunpack.c.h.bf16 %v1401
    %v1406 = vmax.f32 %v1402, 0.0
    %v1407 = vmax.f32 %v1403, 0.0
    %v1408 = vmax.f32 %v1404, 0.0
    %v1409 = vmax.f32 %v1405, 0.0
    %v1410 = vpack.c.bf16 %v1407, %v1406
    %v1411 = vpack.c.bf16 %v1409, %v1408
    %v1412 = vmin.f32 %v1402, 0.0
    %v1413 = vmin.f32 %v1403, 0.0
    %v1414 = vmin.f32 %v1404, 0.0
    %v1415 = vmin.f32 %v1405, 0.0
    %v1416 = vpack.c.bf16 %v1413, %v1412
    %v1417 = vpack.c.bf16 %v1415, %v1414
    %v1418 = vunpack.c.l.bf16 %v1416
    %v1419 = vunpack.c.h.bf16 %v1416
    %v1420 = vunpack.c.l.bf16 %v1417
    %v1421 = vunpack.c.h.bf16 %v1417
    %v1422 = vmul.f32 %v1418, 1.442695
    %v1423 = vpow.pop %v1422
    %v1424 = vmul.f32 %v1419, 1.442695
    %v1425 = vpow.pop %v1424
    %v1426 = vmul.f32 %v1420, 1.442695
    %v1427 = vpow.pop %v1426
    %v1428 = vmul.f32 %v1421, 1.442695
    %v1429 = vpow.pop %v1428
    %v1430 = vpack.c.bf16 %v1425, %v1423
    %v1431 = vpack.c.bf16 %v1429, %v1427
    %v1432 = vunpack.c.l.bf16 %v1430
    %v1433 = vunpack.c.h.bf16 %v1430
    %v1434 = vunpack.c.l.bf16 %v1431
    %v1435 = vunpack.c.h.bf16 %v1431
    %v1436 = vsub.f32 %v1432, 1.0
    %v1437 = vsub.f32 %v1433, 1.0
    %v1438 = vsub.f32 %v1434, 1.0
    %v1439 = vsub.f32 %v1435, 1.0
    %v1440 = vpack.c.bf16 %v1437, %v1436
    %v1441 = vpack.c.bf16 %v1439, %v1438
    %v1442 = vunpack.c.l.bf16 %v1440
    %v1443 = vunpack.c.h.bf16 %v1440
    %v1444 = vunpack.c.l.bf16 %v1441
    %v1445 = vunpack.c.h.bf16 %v1441
    %v1446 = vmul.f32 %v1442, 1.671875
    %v1447 = vmul.f32 %v1443, 1.671875
    %v1448 = vmul.f32 %v1444, 1.671875
    %v1449 = vmul.f32 %v1445, 1.671875
    %v1450 = vpack.c.bf16 %v1447, %v1446
    %v1451 = vpack.c.bf16 %v1449, %v1448
    %v1452 = vunpack.c.l.bf16 %v1410
    %v1453 = vunpack.c.h.bf16 %v1410
    %v1454 = vunpack.c.l.bf16 %v1411
    %v1455 = vunpack.c.h.bf16 %v1411
    %v1456 = vunpack.c.l.bf16 %v1450
    %v1457 = vunpack.c.h.bf16 %v1450
    %v1458 = vunpack.c.l.bf16 %v1451
    %v1459 = vunpack.c.h.bf16 %v1451
    %v1460 = vadd.f32 %v1452, %v1456
    %v1461 = vadd.f32 %v1453, %v1457
    %v1462 = vadd.f32 %v1454, %v1458
    %v1463 = vadd.f32 %v1455, %v1459
    %v1464 = vpack.c.bf16 %v1462, %v1460
    %v1465 = vpack.c.bf16 %v1463, %v1461
    %s1466 = scalar_lea.vmem [#allocation3], 1024
    %v1467 = vld [vmem:[%s1466] sm:$0xff]
    %v1468 = vld [vmem:[%s1466 + $0x8] sm:$0xff]
    %v1469 = vld [vmem:[%s1466 + $0x10] sm:$0xff]
    %v1470 = vld [vmem:[%s1466 + $0x18] sm:$0xff]
    %v1471 = vld [vmem:[%s1466 + $0x20] sm:$0xff]
    %v1472 = vld [vmem:[%s1466 + $0x28] sm:$0xff]
    %v1473 = vld [vmem:[%s1466 + $0x30] sm:$0xff]
    %v1474 = vld [vmem:[%s1466 + $0x38] sm:$0xff]
    %v1475 = vld [vmem:[%s1466 + $0x40] sm:$0xff]
    %v1476 = vld [vmem:[%s1466 + $0x48] sm:$0xff]
    %v1477 = vld [vmem:[%s1466 + $0x50] sm:$0xff]
    %v1478 = vld [vmem:[%s1466 + $0x58] sm:$0xff]
    %v1479 = vld [vmem:[%s1466 + $0x60] sm:$0xff]
    %v1480 = vld [vmem:[%s1466 + $0x68] sm:$0xff]
    %v1481 = vld [vmem:[%s1466 + $0x70] sm:$0xff]
    %v1482 = vld [vmem:[%s1466 + $0x78] sm:$0xff]
    %v1483 = vld [vmem:[%s1466 + $0x80] sm:$0xff]
    %v1484 = vld [vmem:[%s1466 + $0x88] sm:$0xff]
    %v1485 = vld [vmem:[%s1466 + $0x90] sm:$0xff]
    %v1486 = vld [vmem:[%s1466 + $0x98] sm:$0xff]
    %v1487 = vld [vmem:[%s1466 + $0xa0] sm:$0xff]
    %v1488 = vld [vmem:[%s1466 + $0xa8] sm:$0xff]
    %v1489 = vld [vmem:[%s1466 + $0xb0] sm:$0xff]
    %v1490 = vld [vmem:[%s1466 + $0xb8] sm:$0xff]
    %v1491 = vld [vmem:[%s1466 + $0xc0] sm:$0xff]
    %v1492 = vld [vmem:[%s1466 + $0xc8] sm:$0xff]
    %v1493 = vld [vmem:[%s1466 + $0xd0] sm:$0xff]
    %v1494 = vld [vmem:[%s1466 + $0xd8] sm:$0xff]
    %v1495 = vld [vmem:[%s1466 + $0xe0] sm:$0xff]
    %v1496 = vld [vmem:[%s1466 + $0xe8] sm:$0xff]
    %v1497 = vld [vmem:[%s1466 + $0xf0] sm:$0xff]
    %v1498 = vld [vmem:[%s1466 + $0xf8] sm:$0xff]
    %s1499 = scalar_lea.vmem %s4, 8
    %v1500 = vld [vmem:[%s1499] sm:$0x3]
    %v1502 = vperm.slane %v1500, 0
    %v1503 = vperm.slane %v1500, 1
    %v1538 = vunpack.c.l.b16 %v1467
    %v1539 = vunpack.c.h.b16 %v1467
    %v1540 = vunpack.c.l.b16 %v1468
    %v1541 = vunpack.c.h.b16 %v1468
    %v1542 = vunpack.c.l.b16 %v1469
    %v1543 = vunpack.c.h.b16 %v1469
    %v1544 = vunpack.c.l.b16 %v1470
    %v1545 = vunpack.c.h.b16 %v1470
    %v1546 = vunpack.c.l.b16 %v1471
    %v1547 = vunpack.c.h.b16 %v1471
    %v1548 = vunpack.c.l.b16 %v1472
    %v1549 = vunpack.c.h.b16 %v1472
    %v1550 = vunpack.c.l.b16 %v1473
    %v1551 = vunpack.c.h.b16 %v1473
    %v1552 = vunpack.c.l.b16 %v1474
    %v1553 = vunpack.c.h.b16 %v1474
    %v1554 = vunpack.c.l.b16 %v1475
    %v1555 = vunpack.c.h.b16 %v1475
    %v1556 = vunpack.c.l.b16 %v1476
    %v1557 = vunpack.c.h.b16 %v1476
    %v1558 = vunpack.c.l.b16 %v1477
    %v1559 = vunpack.c.h.b16 %v1477
    %v1560 = vunpack.c.l.b16 %v1478
    %v1561 = vunpack.c.h.b16 %v1478
    %v1562 = vunpack.c.l.b16 %v1479
    %v1563 = vunpack.c.h.b16 %v1479
    %v1564 = vunpack.c.l.b16 %v1480
    %v1565 = vunpack.c.h.b16 %v1480
    %v1566 = vunpack.c.l.b16 %v1481
    %v1567 = vunpack.c.h.b16 %v1481
    %v1568 = vunpack.c.l.b16 %v1482
    %v1569 = vunpack.c.h.b16 %v1482
    %v1570 = vunpack.c.l.b16 %v1483
    %v1571 = vunpack.c.h.b16 %v1483
    %v1572 = vunpack.c.l.b16 %v1484
    %v1573 = vunpack.c.h.b16 %v1484
    %v1574 = vunpack.c.l.b16 %v1485
    %v1575 = vunpack.c.h.b16 %v1485
    %v1576 = vunpack.c.l.b16 %v1486
    %v1577 = vunpack.c.h.b16 %v1486
    %v1578 = vunpack.c.l.b16 %v1487
    %v1579 = vunpack.c.h.b16 %v1487
    %v1580 = vunpack.c.l.b16 %v1488
    %v1581 = vunpack.c.h.b16 %v1488
    %v1582 = vunpack.c.l.b16 %v1489
    %v1583 = vunpack.c.h.b16 %v1489
    %v1584 = vunpack.c.l.b16 %v1490
    %v1585 = vunpack.c.h.b16 %v1490
    %v1586 = vunpack.c.l.b16 %v1491
    %v1587 = vunpack.c.h.b16 %v1491
    %v1588 = vunpack.c.l.b16 %v1492
    %v1589 = vunpack.c.h.b16 %v1492
    %v1590 = vunpack.c.l.b16 %v1493
    %v1591 = vunpack.c.h.b16 %v1493
    %v1592 = vunpack.c.l.b16 %v1494
    %v1593 = vunpack.c.h.b16 %v1494
    %v1594 = vunpack.c.l.b16 %v1495
    %v1595 = vunpack.c.h.b16 %v1495
    %v1596 = vunpack.c.l.b16 %v1496
    %v1597 = vunpack.c.h.b16 %v1496
    %v1598 = vunpack.c.l.b16 %v1497
    %v1599 = vunpack.c.h.b16 %v1497
    %v1600 = vunpack.c.l.b16 %v1498
    %v1601 = vunpack.c.h.b16 %v1498
    %v1602 = vpack.c.b16 %v1540, %v1538
    %v1603 = vpack.c.b16 %v1541, %v1539
    %v1604 = vpack.c.b16 %v1544, %v1542
    %v1605 = vpack.c.b16 %v1545, %v1543
    %v1606 = vpack.c.b16 %v1548, %v1546
    %v1607 = vpack.c.b16 %v1549, %v1547
    %v1608 = vpack.c.b16 %v1552, %v1550
    %v1609 = vpack.c.b16 %v1553, %v1551
    %v1610 = vpack.c.b16 %v1556, %v1554
    %v1611 = vpack.c.b16 %v1557, %v1555
    %v1612 = vpack.c.b16 %v1560, %v1558
    %v1613 = vpack.c.b16 %v1561, %v1559
    %v1614 = vpack.c.b16 %v1564, %v1562
    %v1615 = vpack.c.b16 %v1565, %v1563
    %v1616 = vpack.c.b16 %v1568, %v1566
    %v1617 = vpack.c.b16 %v1569, %v1567
    %v1618 = vpack.c.b16 %v1572, %v1570
    %v1619 = vpack.c.b16 %v1573, %v1571
    %v1620 = vpack.c.b16 %v1576, %v1574
    %v1621 = vpack.c.b16 %v1577, %v1575
    %v1622 = vpack.c.b16 %v1580, %v1578
    %v1623 = vpack.c.b16 %v1581, %v1579
    %v1624 = vpack.c.b16 %v1584, %v1582
    %v1625 = vpack.c.b16 %v1585, %v1583
    %v1626 = vpack.c.b16 %v1588, %v1586
    %v1627 = vpack.c.b16 %v1589, %v1587
    %v1628 = vpack.c.b16 %v1592, %v1590
    %v1629 = vpack.c.b16 %v1593, %v1591
    %v1630 = vpack.c.b16 %v1596, %v1594
    %v1631 = vpack.c.b16 %v1597, %v1595
    %v1632 = vpack.c.b16 %v1600, %v1598
    %v1633 = vpack.c.b16 %v1601, %v1599
    %1666 = vmatpush.bf16.msra.mxu0 %v1616
    %1667 = vmatpush.bf16.msra.mxu0 %v1614
    %1668 = vmatpush.bf16.msra.mxu0 %v1612
    %1669 = vmatpush.bf16.msra.mxu0 %v1610
    %1670 = vmatpush.bf16.msra.mxu0 %v1608
    %1671 = vmatpush.bf16.msra.mxu0 %v1606
    %1672 = vmatpush.bf16.msra.mxu0 %v1604
    %1673 = vmatpush.bf16.msra.mxu0 %v1602
    %1674 = vmatmul.bf16.gmra.mxu0 %v1464
    %v1675 = vpop.f32.mrf.mxu0
    %v1676 = vadd.f32 %v1502, %v1675
    %v1677 = vpop.f32.mrf.mxu0
    %v1678 = vadd.f32 %v1502, %v1677
    %1679 = vdwg.mxu0
    %1680 = vmatpush.bf16.msra.mxu0 %v1632
    %1681 = vmatpush.bf16.msra.mxu0 %v1630
    %1682 = vmatpush.bf16.msra.mxu0 %v1628
    %1683 = vmatpush.bf16.msra.mxu0 %v1626
    %1684 = vmatpush.bf16.msra.mxu0 %v1624
    %1685 = vmatpush.bf16.msra.mxu0 %v1622
    %1686 = vmatpush.bf16.msra.mxu0 %v1620
    %1687 = vmatpush.bf16.msra.mxu0 %v1618
    %1688 = vmatmul.bf16.gmra.mxu0 %v1465
    %v1689 = vpop.f32.mrf.mxu0
    %v1690 = vadd.f32 %v1676, %v1689
    %v1691 = vpop.f32.mrf.mxu0
    %v1692 = vadd.f32 %v1678, %v1691
    %1693 = vdwg.mxu0
    %1694 = vmatpush.bf16.msra.mxu0 %v1617
    %1695 = vmatpush.bf16.msra.mxu0 %v1615
    %1696 = vmatpush.bf16.msra.mxu0 %v1613
    %1697 = vmatpush.bf16.msra.mxu0 %v1611
    %1698 = vmatpush.bf16.msra.mxu0 %v1609
    %1699 = vmatpush.bf16.msra.mxu0 %v1607
    %1700 = vmatpush.bf16.msra.mxu0 %v1605
    %1701 = vmatpush.bf16.msra.mxu0 %v1603
    %1702 = vmatmul.bf16.gmra.mxu0 %v1464
    %v1703 = vpop.f32.mrf.mxu0
    %v1704 = vadd.f32 %v1503, %v1703
    %v1705 = vpop.f32.mrf.mxu0
    %v1706 = vadd.f32 %v1503, %v1705
    %1707 = vdwg.mxu0
    %1708 = vmatpush.bf16.msra.mxu0 %v1633
    %1709 = vmatpush.bf16.msra.mxu0 %v1631
    %1710 = vmatpush.bf16.msra.mxu0 %v1629
    %1711 = vmatpush.bf16.msra.mxu0 %v1627
    %1712 = vmatpush.bf16.msra.mxu0 %v1625
    %1713 = vmatpush.bf16.msra.mxu0 %v1623
    %1714 = vmatpush.bf16.msra.mxu0 %v1621
    %1715 = vmatpush.bf16.msra.mxu0 %v1619
    %1716 = vmatmul.bf16.gmra.mxu0 %v1465
    %v1717 = vpop.f32.mrf.mxu0
    %v1718 = vadd.f32 %v1704, %v1717
    %v1719 = vpop.f32.mrf.mxu0
    %v1720 = vadd.f32 %v1706, %v1719
    %1721 = vdwg.mxu0
    %v1722 = vpack.c.bf16 %v1718, %v1690
    %v1723 = vpack.c.bf16 %v1720, %v1692
    %v1724 = vunpack.c.l.bf16 %v1722
    %v1725 = vunpack.c.h.bf16 %v1722
    %v1726 = vunpack.c.l.bf16 %v1723
    %v1727 = vunpack.c.h.bf16 %v1723
    %v1728 = vmax.f32 %v1724, 0.0
    %v1729 = vmax.f32 %v1725, 0.0
    %v1730 = vmax.f32 %v1726, 0.0
    %v1731 = vmax.f32 %v1727, 0.0
    %v1732 = vpack.c.bf16 %v1729, %v1728
    %v1733 = vpack.c.bf16 %v1731, %v1730
    %v1734 = vmin.f32 %v1724, 0.0
    %v1735 = vmin.f32 %v1725, 0.0
    %v1736 = vmin.f32 %v1726, 0.0
    %v1737 = vmin.f32 %v1727, 0.0
    %v1738 = vpack.c.bf16 %v1735, %v1734
    %v1739 = vpack.c.bf16 %v1737, %v1736
    %v1740 = vunpack.c.l.bf16 %v1738
    %v1741 = vunpack.c.h.bf16 %v1738
    %v1742 = vunpack.c.l.bf16 %v1739
    %v1743 = vunpack.c.h.bf16 %v1739
    %v1744 = vmul.f32 %v1740, 1.442695
    %v1745 = vpow.pop %v1744
    %v1746 = vmul.f32 %v1741, 1.442695
    %v1747 = vpow.pop %v1746
    %v1748 = vmul.f32 %v1742, 1.442695
    %v1749 = vpow.pop %v1748
    %v1750 = vmul.f32 %v1743, 1.442695
    %v1751 = vpow.pop %v1750
    %v1752 = vpack.c.bf16 %v1747, %v1745
    %v1753 = vpack.c.bf16 %v1751, %v1749
    %v1754 = vunpack.c.l.bf16 %v1752
    %v1755 = vunpack.c.h.bf16 %v1752
    %v1756 = vunpack.c.l.bf16 %v1753
    %v1757 = vunpack.c.h.bf16 %v1753
    %v1758 = vsub.f32 %v1754, 1.0
    %v1759 = vsub.f32 %v1755, 1.0
    %v1760 = vsub.f32 %v1756, 1.0
    %v1761 = vsub.f32 %v1757, 1.0
    %v1762 = vpack.c.bf16 %v1759, %v1758
    %v1763 = vpack.c.bf16 %v1761, %v1760
    %v1764 = vunpack.c.l.bf16 %v1762
    %v1765 = vunpack.c.h.bf16 %v1762
    %v1766 = vunpack.c.l.bf16 %v1763
    %v1767 = vunpack.c.h.bf16 %v1763
    %v1768 = vmul.f32 %v1764, 1.671875
    %v1769 = vmul.f32 %v1765, 1.671875
    %v1770 = vmul.f32 %v1766, 1.671875
    %v1771 = vmul.f32 %v1767, 1.671875
    %v1772 = vpack.c.bf16 %v1769, %v1768
    %v1773 = vpack.c.bf16 %v1771, %v1770
    %v1774 = vunpack.c.l.bf16 %v1732
    %v1775 = vunpack.c.h.bf16 %v1732
    %v1776 = vunpack.c.l.bf16 %v1733
    %v1777 = vunpack.c.h.bf16 %v1733
    %v1778 = vunpack.c.l.bf16 %v1772
    %v1779 = vunpack.c.h.bf16 %v1772
    %v1780 = vunpack.c.l.bf16 %v1773
    %v1781 = vunpack.c.h.bf16 %v1773
    %v1782 = vadd.f32 %v1774, %v1778
    %v1783 = vadd.f32 %v1775, %v1779
    %v1784 = vadd.f32 %v1776, %v1780
    %v1785 = vadd.f32 %v1777, %v1781
    %v1786 = vpack.c.bf16 %v1784, %v1782
    %v1787 = vpack.c.bf16 %v1785, %v1783
    %s1788 = scalar_lea.vmem [#allocation3], 1280
    %v1789 = vld [vmem:[%s1788] sm:$0xff]
    %v1790 = vld [vmem:[%s1788 + $0x8] sm:$0xff]
    %v1791 = vld [vmem:[%s1788 + $0x10] sm:$0xff]
    %v1792 = vld [vmem:[%s1788 + $0x18] sm:$0xff]
    %v1793 = vld [vmem:[%s1788 + $0x20] sm:$0xff]
    %v1794 = vld [vmem:[%s1788 + $0x28] sm:$0xff]
    %v1795 = vld [vmem:[%s1788 + $0x30] sm:$0xff]
    %v1796 = vld [vmem:[%s1788 + $0x38] sm:$0xff]
    %v1797 = vld [vmem:[%s1788 + $0x40] sm:$0xff]
    %v1798 = vld [vmem:[%s1788 + $0x48] sm:$0xff]
    %v1799 = vld [vmem:[%s1788 + $0x50] sm:$0xff]
    %v1800 = vld [vmem:[%s1788 + $0x58] sm:$0xff]
    %v1801 = vld [vmem:[%s1788 + $0x60] sm:$0xff]
    %v1802 = vld [vmem:[%s1788 + $0x68] sm:$0xff]
    %v1803 = vld [vmem:[%s1788 + $0x70] sm:$0xff]
    %v1804 = vld [vmem:[%s1788 + $0x78] sm:$0xff]
    %v1805 = vld [vmem:[%s1788 + $0x80] sm:$0xff]
    %v1806 = vld [vmem:[%s1788 + $0x88] sm:$0xff]
    %v1807 = vld [vmem:[%s1788 + $0x90] sm:$0xff]
    %v1808 = vld [vmem:[%s1788 + $0x98] sm:$0xff]
    %v1809 = vld [vmem:[%s1788 + $0xa0] sm:$0xff]
    %v1810 = vld [vmem:[%s1788 + $0xa8] sm:$0xff]
    %v1811 = vld [vmem:[%s1788 + $0xb0] sm:$0xff]
    %v1812 = vld [vmem:[%s1788 + $0xb8] sm:$0xff]
    %v1813 = vld [vmem:[%s1788 + $0xc0] sm:$0xff]
    %v1814 = vld [vmem:[%s1788 + $0xc8] sm:$0xff]
    %v1815 = vld [vmem:[%s1788 + $0xd0] sm:$0xff]
    %v1816 = vld [vmem:[%s1788 + $0xd8] sm:$0xff]
    %v1817 = vld [vmem:[%s1788 + $0xe0] sm:$0xff]
    %v1818 = vld [vmem:[%s1788 + $0xe8] sm:$0xff]
    %v1819 = vld [vmem:[%s1788 + $0xf0] sm:$0xff]
    %v1820 = vld [vmem:[%s1788 + $0xf8] sm:$0xff]
    %s1821 = scalar_lea.vmem %s4, 10
    %v1822 = vld [vmem:[%s1821] sm:$0x3]
    %v1824 = vperm.slane %v1822, 0
    %v1825 = vperm.slane %v1822, 1
    %v1860 = vunpack.c.l.b16 %v1789
    %v1861 = vunpack.c.h.b16 %v1789
    %v1862 = vunpack.c.l.b16 %v1790
    %v1863 = vunpack.c.h.b16 %v1790
    %v1864 = vunpack.c.l.b16 %v1791
    %v1865 = vunpack.c.h.b16 %v1791
    %v1866 = vunpack.c.l.b16 %v1792
    %v1867 = vunpack.c.h.b16 %v1792
    %v1868 = vunpack.c.l.b16 %v1793
    %v1869 = vunpack.c.h.b16 %v1793
    %v1870 = vunpack.c.l.b16 %v1794
    %v1871 = vunpack.c.h.b16 %v1794
    %v1872 = vunpack.c.l.b16 %v1795
    %v1873 = vunpack.c.h.b16 %v1795
    %v1874 = vunpack.c.l.b16 %v1796
    %v1875 = vunpack.c.h.b16 %v1796
    %v1876 = vunpack.c.l.b16 %v1797
    %v1877 = vunpack.c.h.b16 %v1797
    %v1878 = vunpack.c.l.b16 %v1798
    %v1879 = vunpack.c.h.b16 %v1798
    %v1880 = vunpack.c.l.b16 %v1799
    %v1881 = vunpack.c.h.b16 %v1799
    %v1882 = vunpack.c.l.b16 %v1800
    %v1883 = vunpack.c.h.b16 %v1800
    %v1884 = vunpack.c.l.b16 %v1801
    %v1885 = vunpack.c.h.b16 %v1801
    %v1886 = vunpack.c.l.b16 %v1802
    %v1887 = vunpack.c.h.b16 %v1802
    %v1888 = vunpack.c.l.b16 %v1803
    %v1889 = vunpack.c.h.b16 %v1803
    %v1890 = vunpack.c.l.b16 %v1804
    %v1891 = vunpack.c.h.b16 %v1804
    %v1892 = vunpack.c.l.b16 %v1805
    %v1893 = vunpack.c.h.b16 %v1805
    %v1894 = vunpack.c.l.b16 %v1806
    %v1895 = vunpack.c.h.b16 %v1806
    %v1896 = vunpack.c.l.b16 %v1807
    %v1897 = vunpack.c.h.b16 %v1807
    %v1898 = vunpack.c.l.b16 %v1808
    %v1899 = vunpack.c.h.b16 %v1808
    %v1900 = vunpack.c.l.b16 %v1809
    %v1901 = vunpack.c.h.b16 %v1809
    %v1902 = vunpack.c.l.b16 %v1810
    %v1903 = vunpack.c.h.b16 %v1810
    %v1904 = vunpack.c.l.b16 %v1811
    %v1905 = vunpack.c.h.b16 %v1811
    %v1906 = vunpack.c.l.b16 %v1812
    %v1907 = vunpack.c.h.b16 %v1812
    %v1908 = vunpack.c.l.b16 %v1813
    %v1909 = vunpack.c.h.b16 %v1813
    %v1910 = vunpack.c.l.b16 %v1814
    %v1911 = vunpack.c.h.b16 %v1814
    %v1912 = vunpack.c.l.b16 %v1815
    %v1913 = vunpack.c.h.b16 %v1815
    %v1914 = vunpack.c.l.b16 %v1816
    %v1915 = vunpack.c.h.b16 %v1816
    %v1916 = vunpack.c.l.b16 %v1817
    %v1917 = vunpack.c.h.b16 %v1817
    %v1918 = vunpack.c.l.b16 %v1818
    %v1919 = vunpack.c.h.b16 %v1818
    %v1920 = vunpack.c.l.b16 %v1819
    %v1921 = vunpack.c.h.b16 %v1819
    %v1922 = vunpack.c.l.b16 %v1820
    %v1923 = vunpack.c.h.b16 %v1820
    %v1924 = vpack.c.b16 %v1862, %v1860
    %v1925 = vpack.c.b16 %v1863, %v1861
    %v1926 = vpack.c.b16 %v1866, %v1864
    %v1927 = vpack.c.b16 %v1867, %v1865
    %v1928 = vpack.c.b16 %v1870, %v1868
    %v1929 = vpack.c.b16 %v1871, %v1869
    %v1930 = vpack.c.b16 %v1874, %v1872
    %v1931 = vpack.c.b16 %v1875, %v1873
    %v1932 = vpack.c.b16 %v1878, %v1876
    %v1933 = vpack.c.b16 %v1879, %v1877
    %v1934 = vpack.c.b16 %v1882, %v1880
    %v1935 = vpack.c.b16 %v1883, %v1881
    %v1936 = vpack.c.b16 %v1886, %v1884
    %v1937 = vpack.c.b16 %v1887, %v1885
    %v1938 = vpack.c.b16 %v1890, %v1888
    %v1939 = vpack.c.b16 %v1891, %v1889
    %v1940 = vpack.c.b16 %v1894, %v1892
    %v1941 = vpack.c.b16 %v1895, %v1893
    %v1942 = vpack.c.b16 %v1898, %v1896
    %v1943 = vpack.c.b16 %v1899, %v1897
    %v1944 = vpack.c.b16 %v1902, %v1900
    %v1945 = vpack.c.b16 %v1903, %v1901
    %v1946 = vpack.c.b16 %v1906, %v1904
    %v1947 = vpack.c.b16 %v1907, %v1905
    %v1948 = vpack.c.b16 %v1910, %v1908
    %v1949 = vpack.c.b16 %v1911, %v1909
    %v1950 = vpack.c.b16 %v1914, %v1912
    %v1951 = vpack.c.b16 %v1915, %v1913
    %v1952 = vpack.c.b16 %v1918, %v1916
    %v1953 = vpack.c.b16 %v1919, %v1917
    %v1954 = vpack.c.b16 %v1922, %v1920
    %v1955 = vpack.c.b16 %v1923, %v1921
    %1988 = vmatpush.bf16.msra.mxu0 %v1938
    %1989 = vmatpush.bf16.msra.mxu0 %v1936
    %1990 = vmatpush.bf16.msra.mxu0 %v1934
    %1991 = vmatpush.bf16.msra.mxu0 %v1932
    %1992 = vmatpush.bf16.msra.mxu0 %v1930
    %1993 = vmatpush.bf16.msra.mxu0 %v1928
    %1994 = vmatpush.bf16.msra.mxu0 %v1926
    %1995 = vmatpush.bf16.msra.mxu0 %v1924
    %1996 = vmatmul.bf16.gmra.mxu0 %v1786
    %v1997 = vpop.f32.mrf.mxu0
    %v1998 = vadd.f32 %v1824, %v1997
    %v1999 = vpop.f32.mrf.mxu0
    %v2000 = vadd.f32 %v1824, %v1999
    %2001 = vdwg.mxu0
    %2002 = vmatpush.bf16.msra.mxu0 %v1954
    %2003 = vmatpush.bf16.msra.mxu0 %v1952
    %2004 = vmatpush.bf16.msra.mxu0 %v1950
    %2005 = vmatpush.bf16.msra.mxu0 %v1948
    %2006 = vmatpush.bf16.msra.mxu0 %v1946
    %2007 = vmatpush.bf16.msra.mxu0 %v1944
    %2008 = vmatpush.bf16.msra.mxu0 %v1942
    %2009 = vmatpush.bf16.msra.mxu0 %v1940
    %2010 = vmatmul.bf16.gmra.mxu0 %v1787
    %v2011 = vpop.f32.mrf.mxu0
    %v2012 = vadd.f32 %v1998, %v2011
    %v2013 = vpop.f32.mrf.mxu0
    %v2014 = vadd.f32 %v2000, %v2013
    %2015 = vdwg.mxu0
    %2016 = vmatpush.bf16.msra.mxu0 %v1939
    %2017 = vmatpush.bf16.msra.mxu0 %v1937
    %2018 = vmatpush.bf16.msra.mxu0 %v1935
    %2019 = vmatpush.bf16.msra.mxu0 %v1933
    %2020 = vmatpush.bf16.msra.mxu0 %v1931
    %2021 = vmatpush.bf16.msra.mxu0 %v1929
    %2022 = vmatpush.bf16.msra.mxu0 %v1927
    %2023 = vmatpush.bf16.msra.mxu0 %v1925
    %2024 = vmatmul.bf16.gmra.mxu0 %v1786
    %v2025 = vpop.f32.mrf.mxu0
    %v2026 = vadd.f32 %v1825, %v2025
    %v2027 = vpop.f32.mrf.mxu0
    %v2028 = vadd.f32 %v1825, %v2027
    %2029 = vdwg.mxu0
    %2030 = vmatpush.bf16.msra.mxu0 %v1955
    %2031 = vmatpush.bf16.msra.mxu0 %v1953
    %2032 = vmatpush.bf16.msra.mxu0 %v1951
    %2033 = vmatpush.bf16.msra.mxu0 %v1949
    %2034 = vmatpush.bf16.msra.mxu0 %v1947
    %2035 = vmatpush.bf16.msra.mxu0 %v1945
    %2036 = vmatpush.bf16.msra.mxu0 %v1943
    %2037 = vmatpush.bf16.msra.mxu0 %v1941
    %2038 = vmatmul.bf16.gmra.mxu0 %v1787
    %v2039 = vpop.f32.mrf.mxu0
    %v2040 = vadd.f32 %v2026, %v2039
    %v2041 = vpop.f32.mrf.mxu0
    %v2042 = vadd.f32 %v2028, %v2041
    %2043 = vdwg.mxu0
    %v2044 = vpack.c.bf16 %v2040, %v2012
    %v2045 = vpack.c.bf16 %v2042, %v2014
    %v2046 = vunpack.c.l.bf16 %v2044
    %v2047 = vunpack.c.h.bf16 %v2044
    %v2048 = vunpack.c.l.bf16 %v2045
    %v2049 = vunpack.c.h.bf16 %v2045
    %v2050 = vmax.f32 %v2046, 0.0
    %v2051 = vmax.f32 %v2047, 0.0
    %v2052 = vmax.f32 %v2048, 0.0
    %v2053 = vmax.f32 %v2049, 0.0
    %v2054 = vpack.c.bf16 %v2051, %v2050
    %v2055 = vpack.c.bf16 %v2053, %v2052
    %v2056 = vmin.f32 %v2046, 0.0
    %v2057 = vmin.f32 %v2047, 0.0
    %v2058 = vmin.f32 %v2048, 0.0
    %v2059 = vmin.f32 %v2049, 0.0
    %v2060 = vpack.c.bf16 %v2057, %v2056
    %v2061 = vpack.c.bf16 %v2059, %v2058
    %v2062 = vunpack.c.l.bf16 %v2060
    %v2063 = vunpack.c.h.bf16 %v2060
    %v2064 = vunpack.c.l.bf16 %v2061
    %v2065 = vunpack.c.h.bf16 %v2061
    %v2066 = vmul.f32 %v2062, 1.442695
    %v2067 = vpow.pop %v2066
    %v2068 = vmul.f32 %v2063, 1.442695
    %v2069 = vpow.pop %v2068
    %v2070 = vmul.f32 %v2064, 1.442695
    %v2071 = vpow.pop %v2070
    %v2072 = vmul.f32 %v2065, 1.442695
    %v2073 = vpow.pop %v2072
    %v2074 = vpack.c.bf16 %v2069, %v2067
    %v2075 = vpack.c.bf16 %v2073, %v2071
    %v2076 = vunpack.c.l.bf16 %v2074
    %v2077 = vunpack.c.h.bf16 %v2074
    %v2078 = vunpack.c.l.bf16 %v2075
    %v2079 = vunpack.c.h.bf16 %v2075
    %v2080 = vsub.f32 %v2076, 1.0
    %v2081 = vsub.f32 %v2077, 1.0
    %v2082 = vsub.f32 %v2078, 1.0
    %v2083 = vsub.f32 %v2079, 1.0
    %v2084 = vpack.c.bf16 %v2081, %v2080
    %v2085 = vpack.c.bf16 %v2083, %v2082
    %v2086 = vunpack.c.l.bf16 %v2084
    %v2087 = vunpack.c.h.bf16 %v2084
    %v2088 = vunpack.c.l.bf16 %v2085
    %v2089 = vunpack.c.h.bf16 %v2085
    %v2090 = vmul.f32 %v2086, 1.671875
    %v2091 = vmul.f32 %v2087, 1.671875
    %v2092 = vmul.f32 %v2088, 1.671875
    %v2093 = vmul.f32 %v2089, 1.671875
    %v2094 = vpack.c.bf16 %v2091, %v2090
    %v2095 = vpack.c.bf16 %v2093, %v2092
    %v2096 = vunpack.c.l.bf16 %v2054
    %v2097 = vunpack.c.h.bf16 %v2054
    %v2098 = vunpack.c.l.bf16 %v2055
    %v2099 = vunpack.c.h.bf16 %v2055
    %v2100 = vunpack.c.l.bf16 %v2094
    %v2101 = vunpack.c.h.bf16 %v2094
    %v2102 = vunpack.c.l.bf16 %v2095
    %v2103 = vunpack.c.h.bf16 %v2095
    %v2104 = vadd.f32 %v2096, %v2100
    %v2105 = vadd.f32 %v2097, %v2101
    %v2106 = vadd.f32 %v2098, %v2102
    %v2107 = vadd.f32 %v2099, %v2103
    %v2108 = vpack.c.bf16 %v2106, %v2104
    %v2109 = vpack.c.bf16 %v2107, %v2105
    %v2110 = vld [vmem:[%s5] sm:$0x3]
    %s2111 = sld [smem:[#allocation2]]
    %v2112 = vstv %s2111
    %2114 = vst [vmem:[#allocation1] ss:$9 sm:$0xff] %v2110
    %v2115 = vld [vmem:[#allocation1] sm:$0xff]
    %v2116 = vld [vmem:[#allocation1 + $0x9] sm:$0xff]
    %2119 = vmatpush.bf16.xpose.msra.mxu0 0
    %2120 = vmatpush.bf16.xpose.msra.mxu0 0
    %2121 = vmatpush.bf16.xpose.msra.mxu0 0
    %2122 = vmatpush.bf16.xpose.msra.mxu0 0
    %2123 = vmatpush.bf16.xpose.msra.mxu0 0
    %2124 = vmatpush.bf16.xpose.msra.mxu0 0
    %2125 = vmatpush.bf16.xpose.msra.mxu0 0
    %2126 = vmatpush.bf16.xpose.msra.mxu0 %v2108
    %2127 = vmatmul.bf16.gmra.mxu0 %v2115
    %v2128 = vpop.f32.mrf.mxu0
    %v2129 = vadd.f32 %v2112, %v2128
    %v2130 = vpop.f32.mrf.mxu0
    %2131 = vdwg.mxu0
    %2132 = vmatpush.bf16.xpose.msra.mxu0 0
    %2133 = vmatpush.bf16.xpose.msra.mxu0 0
    %2134 = vmatpush.bf16.xpose.msra.mxu0 0
    %2135 = vmatpush.bf16.xpose.msra.mxu0 0
    %2136 = vmatpush.bf16.xpose.msra.mxu0 0
    %2137 = vmatpush.bf16.xpose.msra.mxu0 0
    %2138 = vmatpush.bf16.xpose.msra.mxu0 0
    %2139 = vmatpush.bf16.xpose.msra.mxu0 %v2109
    %2140 = vmatmul.bf16.gmra.mxu0 %v2116
    %v2141 = vpop.f32.mrf.mxu0
    %v2142 = vadd.f32 %v2129, %v2141
    %v2143 = vpop.f32.mrf.mxu0
    %2144 = vdwg.mxu0
    %vm2145 = vcmask 122880
    %2146 = vst.msk [vmem:[%s7] sm:$0x1] %vm2145, %v2142
    // Predicated region
    $region34: #{qnet_forward.1} parent=1 // pred_check
      _
    $region35: #{qnet_forward.1} parent=1 // pred_check_branch
      %2148 = sbr.rel (0) target = $region37
    $region36: #{qnet_forward.1} parent=1 // pred_region
      _
    $region37: #{qnet_forward.1} parent=1 // pred_fallthru
      _
    // Predicated region
    $region38: #{qnet_forward.1} parent=1 // pred_check
      _
    $region39: #{qnet_forward.1} parent=1 // pred_check_branch
      %2150 = sbr.rel (0) target = $region41
    $region40: #{qnet_forward.1} parent=1 // pred_region
      _
    $region41: #{qnet_forward.1} parent=1 // pred_fallthru
      _
    %2151 = vsyncpa [#allocation4], 1

</llo_original>
